<compile_context>
chip_gen: v7x
topology: tpu7x:2x2x1
jax: 0.10.0
libtpu: 0.0.40
codegen_flags: <defaults>
</compile_context>

<pallas_src>
import math
from functools import partial

import jax
import jax.numpy as jnp
from jax import lax
from jax.experimental import pallas as pl
from jax.experimental.pallas import tpu as pltpu

_LN2 = 0.6931471805599453


def _layernorm(v, g, b, eps=1e-5):
    mu = jnp.mean(v, axis=-1, keepdims=True)
    var = jnp.mean((v - mu) ** 2, axis=-1, keepdims=True)  # biased, like torch
    return (v - mu) * lax.rsqrt(var + eps) * g + b


def decoder_block_kernel(
    x_ref,
    ln1g_ref, ln1b_ref, ln2g_ref, ln2b_ref,
    wq_ref, bq_ref, wk_ref, bk_ref, wv_ref, bv_ref, wo_ref, bo_ref,
    w1_ref, b1_ref, w2_ref, b2_ref,
    y_ref, aw_ref,
    q_sc, k_sc, v_sc, acc_sc,
    *, n_head,
):
    h = pl.program_id(1)                    # head index (reduction axis)
    T, d = q_sc.shape[1], q_sc.shape[2]
    scale = 1.0 / math.sqrt(d)

    # ---- head 0: ln1(x) + full-width Q/K/V projections, stash per-head ----
    @pl.when(h == 0)
    def _init():
        x = x_ref[0].astype(jnp.float32)                         # (T, C)
        h1 = _layernorm(x, ln1g_ref[0], ln1b_ref[0])
        h1b = h1.astype(jnp.bfloat16)
        q = jnp.dot(h1b, wq_ref[...].astype(jnp.bfloat16),
                    preferred_element_type=jnp.float32) + bq_ref[0]
        k = jnp.dot(h1b, wk_ref[...].astype(jnp.bfloat16),
                    preferred_element_type=jnp.float32) + bk_ref[0]
        v = jnp.dot(h1b, wv_ref[...].astype(jnp.bfloat16),
                    preferred_element_type=jnp.float32) + bv_ref[0]
        for hh in range(n_head):                                 # static unroll
            q_sc[hh] = q[:, hh * d:(hh + 1) * d]
            k_sc[hh] = k[:, hh * d:(hh + 1) * d]
            v_sc[hh] = v[:, hh * d:(hh + 1) * d]
        acc_sc[...] = jnp.zeros_like(acc_sc)

    # ---- per-head attention (one head per grid step) ----
    qh = (q_sc[h] * scale).astype(jnp.bfloat16)                  # (T, d)
    kh = k_sc[h].astype(jnp.bfloat16)
    vh = v_sc[h].astype(jnp.bfloat16)

    scores = lax.dot_general(qh, kh, (((1,), (1,)), ((), ())),   # q @ k^T
                             preferred_element_type=jnp.float32)  # (T, T) f32

    # ALiBi slope + causal mask generated in-kernel (VPU/EUP, no HBM bias).
    i_idx = lax.broadcasted_iota(jnp.int32, (T, T), 0)
    j_idx = lax.broadcasted_iota(jnp.int32, (T, T), 1)
    rel = (j_idx - i_idx).astype(jnp.float32)                    # <= 0 when causal
    expo = (h + 1).astype(jnp.float32) * (-8.0 / n_head)         # slope exponent
    slope = jnp.exp(jnp.full((1, 1), _LN2, jnp.float32) * expo)  # 2**expo, (1,1)
    scores = scores + jnp.where(j_idx <= i_idx, slope * rel, -1e9)

    # numerically-stable softmax (f32), divide on the EUP
    m = jnp.max(scores, axis=-1, keepdims=True)
    e = jnp.exp(scores - m)
    denom = jnp.sum(e, axis=-1, keepdims=True)
    w = e * pl.reciprocal(denom, approx=True)                    # (T, T)
    aw_ref[0, 0] = w.astype(aw_ref.dtype)

    # fused per-head output projection: acc += (w @ v_h) @ Wo[h*d:(h+1)*d, :]
    out_h = jnp.dot(w.astype(jnp.bfloat16), vh,
                    preferred_element_type=jnp.float32)          # (T, d)
    row = pl.multiple_of(h * d, d)
    wo_h = wo_ref[pl.ds(row, d), :].astype(jnp.bfloat16)         # (d, C)
    acc_sc[...] += jnp.dot(out_h.astype(jnp.bfloat16), wo_h,
                           preferred_element_type=jnp.float32)

    # ---- last head: residual + ln2 + FeedForward + residual ----
    @pl.when(h == n_head - 1)
    def _finalize():
        x = x_ref[0].astype(jnp.float32)
        x1 = x + acc_sc[...] + bo_ref[0]                         # first residual
        h2 = _layernorm(x1, ln2g_ref[0], ln2b_ref[0]).astype(jnp.bfloat16)
        ff = jnp.dot(h2, w1_ref[...].astype(jnp.bfloat16),
                     preferred_element_type=jnp.float32) + b1_ref[0]
        ff = jnp.maximum(ff, 0.0)                                # ReLU
        ff = jnp.dot(ff.astype(jnp.bfloat16), w2_ref[...].astype(jnp.bfloat16),
                     preferred_element_type=jnp.float32) + b2_ref[0]
        y_ref[0] = (x1 + ff).astype(y_ref.dtype)                 # second residual


def init_params(key, n_embed, ff_hidden=100):
    ks = jax.random.split(key, 6)
    std = 0.02
    return {
        "ln1_g": jnp.ones((1, n_embed), jnp.float32),
        "ln1_b": jnp.zeros((1, n_embed), jnp.float32),
        "ln2_g": jnp.ones((1, n_embed), jnp.float32),
        "ln2_b": jnp.zeros((1, n_embed), jnp.float32),
        "wq": std * jax.random.normal(ks[0], (n_embed, n_embed), jnp.float32),
        "bq": jnp.zeros((1, n_embed), jnp.float32),
        "wk": std * jax.random.normal(ks[1], (n_embed, n_embed), jnp.float32),
        "bk": jnp.zeros((1, n_embed), jnp.float32),
        "wv": std * jax.random.normal(ks[2], (n_embed, n_embed), jnp.float32),
        "bv": jnp.zeros((1, n_embed), jnp.float32),
        "wo": std * jax.random.normal(ks[3], (n_embed, n_embed), jnp.float32),
        "bo": jnp.zeros((1, n_embed), jnp.float32),
        "w1": std * jax.random.normal(ks[4], (n_embed, ff_hidden), jnp.float32),
        "b1": jnp.zeros((1, ff_hidden), jnp.float32),
        "w2": std * jax.random.normal(ks[5], (ff_hidden, n_embed), jnp.float32),
        "b2": jnp.zeros((1, n_embed), jnp.float32),
    }


def decoder_block_part3(x, params, n_head, *, aw_dtype=jnp.float32):
    """aw_dtype=jnp.bfloat16 halves the attention-weight HBM writeback traffic."""
    B, T, C = x.shape
    assert C % n_head == 0
    d = C // n_head

    # Zero-pad FF hidden dim up to a lane multiple (100 -> 128); exact.
    w1, b1, w2 = params["w1"], params["b1"], params["w2"]
    hf = w1.shape[1]
    hpad = max(128, -(-hf // 128) * 128)
    if hpad != hf:
        w1 = jnp.pad(w1, ((0, 0), (0, hpad - hf)))
        b1 = jnp.pad(b1, ((0, 0), (0, hpad - hf)))
        w2 = jnp.pad(w2, ((0, hpad - hf), (0, 0)))
    p = dict(params, w1=w1, b1=b1, w2=w2)

    param_order = ["ln1_g", "ln1_b", "ln2_g", "ln2_b",
                   "wq", "bq", "wk", "bk", "wv", "bv", "wo", "bo",
                   "w1", "b1", "w2", "b2"]
    param_arrays = [p[name] for name in param_order]

    def full_spec(arr):
        n = arr.ndim
        return pl.BlockSpec(arr.shape, lambda b, h, n=n: (0,) * n)

    in_specs = ([pl.BlockSpec((1, T, C), lambda b, h: (b, 0, 0))]
                + [full_spec(a) for a in param_arrays])
    out_specs = [
        pl.BlockSpec((1, T, C), lambda b, h: (b, 0, 0)),        # y: resident over heads
        pl.BlockSpec((1, 1, T, T), lambda b, h: (b, h, 0, 0)),  # per-head attn weights
    ]
    out_shape = (
        jax.ShapeDtypeStruct((B, T, C), x.dtype),
        jax.ShapeDtypeStruct((B, n_head, T, T), aw_dtype),
    )
    scratch_shapes = [
        pltpu.VMEM((n_head, T, d), jnp.float32),  # Q per head
        pltpu.VMEM((n_head, T, d), jnp.float32),  # K per head
        pltpu.VMEM((n_head, T, d), jnp.float32),  # V per head
        pltpu.VMEM((T, C), jnp.float32),          # attention-output accumulator
    ]

    fn = pl.pallas_call(
        partial(decoder_block_kernel, n_head=n_head),
        out_shape=out_shape,
        grid_spec=pltpu.PrefetchScalarGridSpec(
            num_scalar_prefetch=0,
            grid=(B, n_head),                     # reduction (head) axis last
            in_specs=in_specs,
            out_specs=out_specs,
            scratch_shapes=scratch_shapes,
        ),
        compiler_params=pltpu.CompilerParams(
            dimension_semantics=("parallel", "arbitrary"),
            vmem_limit_bytes=32 * 1024 * 1024,
        ),
    )
    return fn(x, *param_arrays)


def reference_block(x, params, n_head):
    """Pure-JAX f32 reference (mirrors the PyTorch module)."""
    B, T, C = x.shape
    d = C // n_head
    eps = 1e-5

    def ln(v, g, b):
        mu = v.mean(-1, keepdims=True)
        var = ((v - mu) ** 2).mean(-1, keepdims=True)
        return (v - mu) / jnp.sqrt(var + eps) * g[0] + b[0]

    h1 = ln(x, params["ln1_g"], params["ln1_b"])
    q = h1 @ params["wq"] + params["bq"][0]
    k = h1 @ params["wk"] + params["bk"][0]
    v = h1 @ params["wv"] + params["bv"][0]
    qh = q.reshape(B, T, n_head, d).transpose(0, 2, 1, 3)
    kh = k.reshape(B, T, n_head, d).transpose(0, 2, 1, 3)
    vh = v.reshape(B, T, n_head, d).transpose(0, 2, 1, 3)
    scores = jnp.einsum("bhqd,bhkd->bhqk", qh, kh) / math.sqrt(d)
    slopes = jnp.array([2.0 ** (-8.0 * (i + 1) / n_head) for i in range(n_head)],
                       jnp.float32)
    i_ = jnp.arange(T)[:, None]
    j_ = jnp.arange(T)[None, :]
    rel = (j_ - i_).astype(jnp.float32)
    bias = jnp.where(j_[None] <= i_[None], slopes[:, None, None] * rel[None], -1e9)
    w = jax.nn.softmax(scores + bias[None], axis=-1)
    out = jnp.einsum("bhqk,bhkd->bhqd", w, vh).transpose(0, 2, 1, 3).reshape(B, T, C)
    x1 = x + out @ params["wo"] + params["bo"][0]
    h2 = ln(x1, params["ln2_g"], params["ln2_b"])
    ff = jnp.maximum(h2 @ params["w1"] + params["b1"][0], 0.0) @ params["w2"] \
        + params["b2"][0]
    return x1 + ff, w


if __name__ == "__main__":
    B, T, n_embed, n_head = 2, 8, 32, 4

    key = jax.random.PRNGKey(0)
    kx, kp = jax.random.split(key)
    x = jax.random.normal(kx, (B, T, n_embed), jnp.float32)
    params = init_params(kp, n_embed, ff_hidden=100)

    y, attn_w = decoder_block_part3(x, params, n_head)
    jax.block_until_ready((y, attn_w))

    assert y.shape == (B, T, n_embed)
    assert attn_w.shape == (B, n_head, T, T)
    # softmax rows sum to 1 (approx reciprocal => loose tolerance)
    assert bool(jnp.allclose(jnp.sum(attn_w.astype(jnp.float32), axis=-1), 1.0,
                             atol=1e-2))

    # loose check vs pure-f32 reference (kernel uses bf16 MXU operands)
    y_ref, aw_full = reference_block(x, params, n_head)
    assert bool(jnp.allclose(y, y_ref, atol=5e-2, rtol=5e-2))
    assert bool(jnp.allclose(attn_w.astype(jnp.float32), aw_full,
                             atol=2e-2, rtol=2e-2))

    print("KERNEL_OK")
</pallas_src>

<mosaic_0001>
module attributes {stable_mosaic.version = 11 : i64} {
  func.func @decoder_block_kernel(%arg0: i32, %arg1: i32, %arg2: memref<1x8x32xf32, #tpu.memory_space<vmem>>, %arg3: memref<1x32xf32, #tpu.memory_space<vmem>>, %arg4: memref<1x32xf32, #tpu.memory_space<vmem>>, %arg5: memref<1x32xf32, #tpu.memory_space<vmem>>, %arg6: memref<1x32xf32, #tpu.memory_space<vmem>>, %arg7: memref<32x32xf32, #tpu.memory_space<vmem>>, %arg8: memref<1x32xf32, #tpu.memory_space<vmem>>, %arg9: memref<32x32xf32, #tpu.memory_space<vmem>>, %arg10: memref<1x32xf32, #tpu.memory_space<vmem>>, %arg11: memref<32x32xf32, #tpu.memory_space<vmem>>, %arg12: memref<1x32xf32, #tpu.memory_space<vmem>>, %arg13: memref<32x32xf32, #tpu.memory_space<vmem>>, %arg14: memref<1x32xf32, #tpu.memory_space<vmem>>, %arg15: memref<32x128xf32, #tpu.memory_space<vmem>>, %arg16: memref<1x128xf32, #tpu.memory_space<vmem>>, %arg17: memref<128x32xf32, #tpu.memory_space<vmem>>, %arg18: memref<1x32xf32, #tpu.memory_space<vmem>>, %arg19: memref<1x8x32xf32, #tpu.memory_space<vmem>>, %arg20: memref<1x1x8x8xf32, #tpu.memory_space<vmem>>, %arg21: memref<4x8x8xf32, #tpu.memory_space<vmem>>, %arg22: memref<4x8x8xf32, #tpu.memory_space<vmem>>, %arg23: memref<4x8x8xf32, #tpu.memory_space<vmem>>, %arg24: memref<8x32xf32, #tpu.memory_space<vmem>>) attributes {dimension_semantics = [#tpu.dimension_semantics<parallel>, #tpu.dimension_semantics<arbitrary>], iteration_bounds = array<i64: 2, 4>, scalar_prefetch = 0 : i64, scratch_operands = 4 : i64, tpu.core_type = #tpu.core_type<tc>, window_params = [{transform_indices = @transform_0, window_bounds = array<i64: 1, 8, 32>}, {pipeline_mode = #tpu.pipeline_mode<synchronous>, transform_indices = @transform_1, window_bounds = array<i64: 1, 32>}, {pipeline_mode = #tpu.pipeline_mode<synchronous>, transform_indices = @transform_2, window_bounds = array<i64: 1, 32>}, {pipeline_mode = #tpu.pipeline_mode<synchronous>, transform_indices = @transform_3, window_bounds = array<i64: 1, 32>}, {pipeline_mode = #tpu.pipeline_mode<synchronous>, transform_indices = @transform_4, window_bounds = array<i64: 1, 32>}, {pipeline_mode = #tpu.pipeline_mode<synchronous>, transform_indices = @transform_5, window_bounds = array<i64: 32, 32>}, {pipeline_mode = #tpu.pipeline_mode<synchronous>, transform_indices = @transform_6, window_bounds = array<i64: 1, 32>}, {pipeline_mode = #tpu.pipeline_mode<synchronous>, transform_indices = @transform_7, window_bounds = array<i64: 32, 32>}, {pipeline_mode = #tpu.pipeline_mode<synchronous>, transform_indices = @transform_8, window_bounds = array<i64: 1, 32>}, {pipeline_mode = #tpu.pipeline_mode<synchronous>, transform_indices = @transform_9, window_bounds = array<i64: 32, 32>}, {pipeline_mode = #tpu.pipeline_mode<synchronous>, transform_indices = @transform_10, window_bounds = array<i64: 1, 32>}, {pipeline_mode = #tpu.pipeline_mode<synchronous>, transform_indices = @transform_11, window_bounds = array<i64: 32, 32>}, {pipeline_mode = #tpu.pipeline_mode<synchronous>, transform_indices = @transform_12, window_bounds = array<i64: 1, 32>}, {pipeline_mode = #tpu.pipeline_mode<synchronous>, transform_indices = @transform_13, window_bounds = array<i64: 32, 128>}, {pipeline_mode = #tpu.pipeline_mode<synchronous>, transform_indices = @transform_14, window_bounds = array<i64: 1, 128>}, {pipeline_mode = #tpu.pipeline_mode<synchronous>, transform_indices = @transform_15, window_bounds = array<i64: 128, 32>}, {pipeline_mode = #tpu.pipeline_mode<synchronous>, transform_indices = @transform_16, window_bounds = array<i64: 1, 32>}, {transform_indices = @transform_17, window_bounds = array<i64: 1, 8, 32>}, {transform_indices = @transform_18, window_bounds = array<i64: 1, 1, 8, 8>}]} {
    %c0_i32 = arith.constant 0 : i32
    %0 = arith.cmpi eq, %arg1, %c0_i32 : i32
    %1 = arith.extui %0 : i1 to i32
    %c0_i32_0 = arith.constant 0 : i32
    %2 = arith.cmpi ne, %1, %c0_i32_0 : i32
    scf.if %2 {
      %c0_24 = arith.constant 0 : index
      %c0_25 = arith.constant 0 : index
      %c0_26 = arith.constant 0 : index
      %63 = vector.load %arg2[%c0_24, %c0_25, %c0_26] : memref<1x8x32xf32, #tpu.memory_space<vmem>>, vector<1x8x32xf32>
      %64 = vector.shape_cast %63 : vector<1x8x32xf32> to vector<8x32xf32>
      %c0_27 = arith.constant 0 : index
      %c0_28 = arith.constant 0 : index
      %65 = vector.load %arg3[%c0_27, %c0_28] : memref<1x32xf32, #tpu.memory_space<vmem>>, vector<1x32xf32>
      %66 = vector.shape_cast %65 : vector<1x32xf32> to vector<32xf32>
      %c0_29 = arith.constant 0 : index
      %c0_30 = arith.constant 0 : index
      %67 = vector.load %arg4[%c0_29, %c0_30] : memref<1x32xf32, #tpu.memory_space<vmem>>, vector<1x32xf32>
      %68 = vector.shape_cast %67 : vector<1x32xf32> to vector<32xf32>
      %cst_31 = arith.constant dense<0.000000e+00> : vector<8xf32>
      %69 = vector.multi_reduction <add>, %64, %cst_31 [1] : vector<8x32xf32> to vector<8xf32>
      %70 = vector.shape_cast %69 : vector<8xf32> to vector<8x1xf32>
      %cst_32 = arith.constant 3.200000e+01 : f32
      %71 = vector.broadcast %cst_32 : f32 to vector<8x1xf32>
      %72 = arith.divf %70, %71 : vector<8x1xf32>
      %73 = vector.broadcast %72 : vector<8x1xf32> to vector<8x32xf32>
      %74 = arith.subf %64, %73 : vector<8x32xf32>
      %75 = arith.mulf %74, %74 : vector<8x32xf32>
      %cst_33 = arith.constant dense<0.000000e+00> : vector<8xf32>
      %76 = vector.multi_reduction <add>, %75, %cst_33 [1] : vector<8x32xf32> to vector<8xf32>
      %77 = vector.shape_cast %76 : vector<8xf32> to vector<8x1xf32>
      %cst_34 = arith.constant 3.200000e+01 : f32
      %78 = vector.broadcast %cst_34 : f32 to vector<8x1xf32>
      %79 = arith.divf %77, %78 : vector<8x1xf32>
      %80 = vector.broadcast %72 : vector<8x1xf32> to vector<8x32xf32>
      %81 = arith.subf %64, %80 : vector<8x32xf32>
      %cst_35 = arith.constant 9.99999974E-6 : f32
      %82 = vector.broadcast %cst_35 : f32 to vector<8x1xf32>
      %83 = arith.addf %79, %82 : vector<8x1xf32>
      %84 = math.rsqrt %83 : vector<8x1xf32>
      %85 = vector.broadcast %84 : vector<8x1xf32> to vector<8x32xf32>
      %86 = arith.mulf %81, %85 : vector<8x32xf32>
      %87 = vector.shape_cast %66 : vector<32xf32> to vector<1x32xf32>
      %88 = vector.broadcast %87 : vector<1x32xf32> to vector<8x32xf32>
      %89 = arith.mulf %86, %88 : vector<8x32xf32>
      %90 = vector.shape_cast %68 : vector<32xf32> to vector<1x32xf32>
      %91 = vector.broadcast %90 : vector<1x32xf32> to vector<8x32xf32>
      %92 = arith.addf %89, %91 : vector<8x32xf32>
      %93 = arith.truncf %92 : vector<8x32xf32> to vector<8x32xbf16>
      %c0_36 = arith.constant 0 : index
      %c0_37 = arith.constant 0 : index
      %94 = vector.load %arg7[%c0_36, %c0_37] : memref<32x32xf32, #tpu.memory_space<vmem>>, vector<32x32xf32>
      %95 = arith.truncf %94 : vector<32x32xf32> to vector<32x32xbf16>
      %cst_38 = arith.constant dense<0.000000e+00> : vector<8x32xf32>
      %96 = tpu.matmul %93, %95, %cst_38 {dimension_numbers = #tpu.dot_dimension_numbers<[1], [0], [0], [1], [0, 0, 1, 1], [], []>} : vector<8x32xbf16>, vector<32x32xbf16>, vector<8x32xf32> -> vector<8x32xf32>
      %c0_39 = arith.constant 0 : index
      %c0_40 = arith.constant 0 : index
      %97 = vector.load %arg8[%c0_39, %c0_40] : memref<1x32xf32, #tpu.memory_space<vmem>>, vector<1x32xf32>
      %98 = vector.shape_cast %97 : vector<1x32xf32> to vector<32xf32>
      %99 = vector.shape_cast %98 : vector<32xf32> to vector<1x32xf32>
      %100 = vector.broadcast %99 : vector<1x32xf32> to vector<8x32xf32>
      %101 = arith.addf %96, %100 : vector<8x32xf32>
      %c0_41 = arith.constant 0 : index
      %c0_42 = arith.constant 0 : index
      %102 = vector.load %arg9[%c0_41, %c0_42] : memref<32x32xf32, #tpu.memory_space<vmem>>, vector<32x32xf32>
      %103 = arith.truncf %102 : vector<32x32xf32> to vector<32x32xbf16>
      %cst_43 = arith.constant dense<0.000000e+00> : vector<8x32xf32>
      %104 = tpu.matmul %93, %103, %cst_43 {dimension_numbers = #tpu.dot_dimension_numbers<[1], [0], [0], [1], [0, 0, 1, 1], [], []>} : vector<8x32xbf16>, vector<32x32xbf16>, vector<8x32xf32> -> vector<8x32xf32>
      %c0_44 = arith.constant 0 : index
      %c0_45 = arith.constant 0 : index
      %105 = vector.load %arg10[%c0_44, %c0_45] : memref<1x32xf32, #tpu.memory_space<vmem>>, vector<1x32xf32>
      %106 = vector.shape_cast %105 : vector<1x32xf32> to vector<32xf32>
      %107 = vector.shape_cast %106 : vector<32xf32> to vector<1x32xf32>
      %108 = vector.broadcast %107 : vector<1x32xf32> to vector<8x32xf32>
      %109 = arith.addf %104, %108 : vector<8x32xf32>
      %c0_46 = arith.constant 0 : index
      %c0_47 = arith.constant 0 : index
      %110 = vector.load %arg11[%c0_46, %c0_47] : memref<32x32xf32, #tpu.memory_space<vmem>>, vector<32x32xf32>
      %111 = arith.truncf %110 : vector<32x32xf32> to vector<32x32xbf16>
      %cst_48 = arith.constant dense<0.000000e+00> : vector<8x32xf32>
      %112 = tpu.matmul %93, %111, %cst_48 {dimension_numbers = #tpu.dot_dimension_numbers<[1], [0], [0], [1], [0, 0, 1, 1], [], []>} : vector<8x32xbf16>, vector<32x32xbf16>, vector<8x32xf32> -> vector<8x32xf32>
      %c0_49 = arith.constant 0 : index
      %c0_50 = arith.constant 0 : index
      %113 = vector.load %arg12[%c0_49, %c0_50] : memref<1x32xf32, #tpu.memory_space<vmem>>, vector<1x32xf32>
      %114 = vector.shape_cast %113 : vector<1x32xf32> to vector<32xf32>
      %115 = vector.shape_cast %114 : vector<32xf32> to vector<1x32xf32>
      %116 = vector.broadcast %115 : vector<1x32xf32> to vector<8x32xf32>
      %117 = arith.addf %112, %116 : vector<8x32xf32>
      %118 = vector.extract_strided_slice %101 {offsets = [0, 0], sizes = [8, 8], strides = [1, 1]} : vector<8x32xf32> to vector<8x8xf32>
      %c0_51 = arith.constant 0 : index
      %c0_52 = arith.constant 0 : index
      %c0_53 = arith.constant 0 : index
      %119 = vector.load %arg21[%c0_51, %c0_52, %c0_53] : memref<4x8x8xf32, #tpu.memory_space<vmem>>, vector<1x8x8xf32>
      %120 = vector.shape_cast %119 : vector<1x8x8xf32> to vector<8x8xf32>
      %121 = vector.shape_cast %118 : vector<8x8xf32> to vector<1x8x8xf32>
      tpu.vector_store %arg21[%c0_51, %c0_52, %c0_53], %121 {strides = array<i32>} : memref<4x8x8xf32, #tpu.memory_space<vmem>>, vector<1x8x8xf32>,
      %122 = vector.extract_strided_slice %109 {offsets = [0, 0], sizes = [8, 8], strides = [1, 1]} : vector<8x32xf32> to vector<8x8xf32>
      %c0_54 = arith.constant 0 : index
      %c0_55 = arith.constant 0 : index
      %c0_56 = arith.constant 0 : index
      %123 = vector.load %arg22[%c0_54, %c0_55, %c0_56] : memref<4x8x8xf32, #tpu.memory_space<vmem>>, vector<1x8x8xf32>
      %124 = vector.shape_cast %123 : vector<1x8x8xf32> to vector<8x8xf32>
      %125 = vector.shape_cast %122 : vector<8x8xf32> to vector<1x8x8xf32>
      tpu.vector_store %arg22[%c0_54, %c0_55, %c0_56], %125 {strides = array<i32>} : memref<4x8x8xf32, #tpu.memory_space<vmem>>, vector<1x8x8xf32>,
      %126 = vector.extract_strided_slice %117 {offsets = [0, 0], sizes = [8, 8], strides = [1, 1]} : vector<8x32xf32> to vector<8x8xf32>
      %c0_57 = arith.constant 0 : index
      %c0_58 = arith.constant 0 : index
      %c0_59 = arith.constant 0 : index
      %127 = vector.load %arg23[%c0_57, %c0_58, %c0_59] : memref<4x8x8xf32, #tpu.memory_space<vmem>>, vector<1x8x8xf32>
      %128 = vector.shape_cast %127 : vector<1x8x8xf32> to vector<8x8xf32>
      %129 = vector.shape_cast %126 : vector<8x8xf32> to vector<1x8x8xf32>
      tpu.vector_store %arg23[%c0_57, %c0_58, %c0_59], %129 {strides = array<i32>} : memref<4x8x8xf32, #tpu.memory_space<vmem>>, vector<1x8x8xf32>,
      %130 = vector.extract_strided_slice %101 {offsets = [0, 8], sizes = [8, 8], strides = [1, 1]} : vector<8x32xf32> to vector<8x8xf32>
      %c1 = arith.constant 1 : index
      %c0_60 = arith.constant 0 : index
      %c0_61 = arith.constant 0 : index
      %131 = vector.load %arg21[%c1, %c0_60, %c0_61] : memref<4x8x8xf32, #tpu.memory_space<vmem>>, vector<1x8x8xf32>
      %132 = vector.shape_cast %131 : vector<1x8x8xf32> to vector<8x8xf32>
      %133 = vector.shape_cast %130 : vector<8x8xf32> to vector<1x8x8xf32>
      tpu.vector_store %arg21[%c1, %c0_60, %c0_61], %133 {strides = array<i32>} : memref<4x8x8xf32, #tpu.memory_space<vmem>>, vector<1x8x8xf32>,
      %134 = vector.extract_strided_slice %109 {offsets = [0, 8], sizes = [8, 8], strides = [1, 1]} : vector<8x32xf32> to vector<8x8xf32>
      %c1_62 = arith.constant 1 : index
      %c0_63 = arith.constant 0 : index
      %c0_64 = arith.constant 0 : index
      %135 = vector.load %arg22[%c1_62, %c0_63, %c0_64] : memref<4x8x8xf32, #tpu.memory_space<vmem>>, vector<1x8x8xf32>
      %136 = vector.shape_cast %135 : vector<1x8x8xf32> to vector<8x8xf32>
      %137 = vector.shape_cast %134 : vector<8x8xf32> to vector<1x8x8xf32>
      tpu.vector_store %arg22[%c1_62, %c0_63, %c0_64], %137 {strides = array<i32>} : memref<4x8x8xf32, #tpu.memory_space<vmem>>, vector<1x8x8xf32>,
      %138 = vector.extract_strided_slice %117 {offsets = [0, 8], sizes = [8, 8], strides = [1, 1]} : vector<8x32xf32> to vector<8x8xf32>
      %c1_65 = arith.constant 1 : index
      %c0_66 = arith.constant 0 : index
      %c0_67 = arith.constant 0 : index
      %139 = vector.load %arg23[%c1_65, %c0_66, %c0_67] : memref<4x8x8xf32, #tpu.memory_space<vmem>>, vector<1x8x8xf32>
      %140 = vector.shape_cast %139 : vector<1x8x8xf32> to vector<8x8xf32>
      %141 = vector.shape_cast %138 : vector<8x8xf32> to vector<1x8x8xf32>
      tpu.vector_store %arg23[%c1_65, %c0_66, %c0_67], %141 {strides = array<i32>} : memref<4x8x8xf32, #tpu.memory_space<vmem>>, vector<1x8x8xf32>,
      %142 = vector.extract_strided_slice %101 {offsets = [0, 16], sizes = [8, 8], strides = [1, 1]} : vector<8x32xf32> to vector<8x8xf32>
      %c2 = arith.constant 2 : index
      %c0_68 = arith.constant 0 : index
      %c0_69 = arith.constant 0 : index
      %143 = vector.load %arg21[%c2, %c0_68, %c0_69] : memref<4x8x8xf32, #tpu.memory_space<vmem>>, vector<1x8x8xf32>
      %144 = vector.shape_cast %143 : vector<1x8x8xf32> to vector<8x8xf32>
      %145 = vector.shape_cast %142 : vector<8x8xf32> to vector<1x8x8xf32>
      tpu.vector_store %arg21[%c2, %c0_68, %c0_69], %145 {strides = array<i32>} : memref<4x8x8xf32, #tpu.memory_space<vmem>>, vector<1x8x8xf32>,
      %146 = vector.extract_strided_slice %109 {offsets = [0, 16], sizes = [8, 8], strides = [1, 1]} : vector<8x32xf32> to vector<8x8xf32>
      %c2_70 = arith.constant 2 : index
      %c0_71 = arith.constant 0 : index
      %c0_72 = arith.constant 0 : index
      %147 = vector.load %arg22[%c2_70, %c0_71, %c0_72] : memref<4x8x8xf32, #tpu.memory_space<vmem>>, vector<1x8x8xf32>
      %148 = vector.shape_cast %147 : vector<1x8x8xf32> to vector<8x8xf32>
      %149 = vector.shape_cast %146 : vector<8x8xf32> to vector<1x8x8xf32>
      tpu.vector_store %arg22[%c2_70, %c0_71, %c0_72], %149 {strides = array<i32>} : memref<4x8x8xf32, #tpu.memory_space<vmem>>, vector<1x8x8xf32>,
      %150 = vector.extract_strided_slice %117 {offsets = [0, 16], sizes = [8, 8], strides = [1, 1]} : vector<8x32xf32> to vector<8x8xf32>
      %c2_73 = arith.constant 2 : index
      %c0_74 = arith.constant 0 : index
      %c0_75 = arith.constant 0 : index
      %151 = vector.load %arg23[%c2_73, %c0_74, %c0_75] : memref<4x8x8xf32, #tpu.memory_space<vmem>>, vector<1x8x8xf32>
      %152 = vector.shape_cast %151 : vector<1x8x8xf32> to vector<8x8xf32>
      %153 = vector.shape_cast %150 : vector<8x8xf32> to vector<1x8x8xf32>
      tpu.vector_store %arg23[%c2_73, %c0_74, %c0_75], %153 {strides = array<i32>} : memref<4x8x8xf32, #tpu.memory_space<vmem>>, vector<1x8x8xf32>,
      %154 = vector.extract_strided_slice %101 {offsets = [0, 24], sizes = [8, 8], strides = [1, 1]} : vector<8x32xf32> to vector<8x8xf32>
      %c3 = arith.constant 3 : index
      %c0_76 = arith.constant 0 : index
      %c0_77 = arith.constant 0 : index
      %155 = vector.load %arg21[%c3, %c0_76, %c0_77] : memref<4x8x8xf32, #tpu.memory_space<vmem>>, vector<1x8x8xf32>
      %156 = vector.shape_cast %155 : vector<1x8x8xf32> to vector<8x8xf32>
      %157 = vector.shape_cast %154 : vector<8x8xf32> to vector<1x8x8xf32>
      tpu.vector_store %arg21[%c3, %c0_76, %c0_77], %157 {strides = array<i32>} : memref<4x8x8xf32, #tpu.memory_space<vmem>>, vector<1x8x8xf32>,
      %158 = vector.extract_strided_slice %109 {offsets = [0, 24], sizes = [8, 8], strides = [1, 1]} : vector<8x32xf32> to vector<8x8xf32>
      %c3_78 = arith.constant 3 : index
      %c0_79 = arith.constant 0 : index
      %c0_80 = arith.constant 0 : index
      %159 = vector.load %arg22[%c3_78, %c0_79, %c0_80] : memref<4x8x8xf32, #tpu.memory_space<vmem>>, vector<1x8x8xf32>
      %160 = vector.shape_cast %159 : vector<1x8x8xf32> to vector<8x8xf32>
      %161 = vector.shape_cast %158 : vector<8x8xf32> to vector<1x8x8xf32>
      tpu.vector_store %arg22[%c3_78, %c0_79, %c0_80], %161 {strides = array<i32>} : memref<4x8x8xf32, #tpu.memory_space<vmem>>, vector<1x8x8xf32>,
      %162 = vector.extract_strided_slice %117 {offsets = [0, 24], sizes = [8, 8], strides = [1, 1]} : vector<8x32xf32> to vector<8x8xf32>
      %c3_81 = arith.constant 3 : index
      %c0_82 = arith.constant 0 : index
      %c0_83 = arith.constant 0 : index
      %163 = vector.load %arg23[%c3_81, %c0_82, %c0_83] : memref<4x8x8xf32, #tpu.memory_space<vmem>>, vector<1x8x8xf32>
      %164 = vector.shape_cast %163 : vector<1x8x8xf32> to vector<8x8xf32>
      %165 = vector.shape_cast %162 : vector<8x8xf32> to vector<1x8x8xf32>
      tpu.vector_store %arg23[%c3_81, %c0_82, %c0_83], %165 {strides = array<i32>} : memref<4x8x8xf32, #tpu.memory_space<vmem>>, vector<1x8x8xf32>,
      %cst_84 = arith.constant 0.000000e+00 : f32
      %166 = vector.broadcast %cst_84 : f32 to vector<8x32xf32>
      %c0_85 = arith.constant 0 : index
      %c0_86 = arith.constant 0 : index
      %167 = vector.load %arg24[%c0_85, %c0_86] : memref<8x32xf32, #tpu.memory_space<vmem>>, vector<8x32xf32>
      tpu.vector_store %arg24[%c0_85, %c0_86], %166 {strides = array<i32>} : memref<8x32xf32, #tpu.memory_space<vmem>>, vector<8x32xf32>,
    } else {
    }
    %3 = arith.index_cast %arg1 : i32 to index
    %c0 = arith.constant 0 : index
    %c0_1 = arith.constant 0 : index
    %4 = vector.load %arg21[%3, %c0, %c0_1] : memref<4x8x8xf32, #tpu.memory_space<vmem>>, vector<1x8x8xf32>
    %5 = vector.shape_cast %4 : vector<1x8x8xf32> to vector<8x8xf32>
    %cst = arith.constant 0.353553385 : f32
    %6 = vector.broadcast %cst : f32 to vector<8x8xf32>
    %7 = arith.mulf %5, %6 : vector<8x8xf32>
    %8 = arith.truncf %7 : vector<8x8xf32> to vector<8x8xbf16>
    %9 = arith.index_cast %arg1 : i32 to index
    %c0_2 = arith.constant 0 : index
    %c0_3 = arith.constant 0 : index
    %10 = vector.load %arg22[%9, %c0_2, %c0_3] : memref<4x8x8xf32, #tpu.memory_space<vmem>>, vector<1x8x8xf32>
    %11 = vector.shape_cast %10 : vector<1x8x8xf32> to vector<8x8xf32>
    %12 = arith.truncf %11 : vector<8x8xf32> to vector<8x8xbf16>
    %13 = arith.index_cast %arg1 : i32 to index
    %c0_4 = arith.constant 0 : index
    %c0_5 = arith.constant 0 : index
    %14 = vector.load %arg23[%13, %c0_4, %c0_5] : memref<4x8x8xf32, #tpu.memory_space<vmem>>, vector<1x8x8xf32>
    %15 = vector.shape_cast %14 : vector<1x8x8xf32> to vector<8x8xf32>
    %16 = arith.truncf %15 : vector<8x8xf32> to vector<8x8xbf16>
    %cst_6 = arith.constant dense<0.000000e+00> : vector<8x8xf32>
    %17 = tpu.matmul %8, %12, %cst_6 {dimension_numbers = #tpu.dot_dimension_numbers<[1], [1], [0], [0], [0, 0, 1, 0], [], []>} : vector<8x8xbf16>, vector<8x8xbf16>, vector<8x8xf32> -> vector<8x8xf32>
    %18 = tpu.iota {dimensions = array<i32: 0>} : vector<8x8xi32>
    %19 = tpu.iota {dimensions = array<i32: 1>} : vector<8x8xi32>
    %20 = arith.subi %19, %18 : vector<8x8xi32>
    %21 = arith.sitofp %20 : vector<8x8xi32> to vector<8x8xf32>
    %c1_i32 = arith.constant 1 : i32
    %22 = arith.addi %arg1, %c1_i32 : i32
    %23 = arith.sitofp %22 : i32 to f32
    %cst_7 = arith.constant -2.000000e+00 : f32
    %24 = arith.mulf %23, %cst_7 : f32
    %cst_8 = arith.constant 0.693147182 : f32
    %25 = vector.broadcast %cst_8 : f32 to vector<1x1xf32>
    %26 = vector.broadcast %24 : f32 to vector<1x1xf32>
    %27 = arith.mulf %25, %26 : vector<1x1xf32>
    %28 = math.exp %27 : vector<1x1xf32>
    %29 = arith.cmpi sle, %19, %18 : vector<8x8xi32>
    %30 = vector.broadcast %28 : vector<1x1xf32> to vector<8x8xf32>
    %31 = arith.mulf %30, %21 : vector<8x8xf32>
    %cst_9 = arith.constant -1.000000e+09 : f32
    %32 = vector.broadcast %cst_9 : f32 to vector<8x8xf32>
    %33 = arith.select %29, %31, %32 : vector<8x8xi1>, vector<8x8xf32>
    %34 = arith.addf %17, %33 : vector<8x8xf32>
    %cst_10 = arith.constant dense<0xFF800000> : vector<8xf32>
    %35 = vector.multi_reduction <maximumf>, %34, %cst_10 [1] : vector<8x8xf32> to vector<8xf32>
    %36 = vector.shape_cast %35 : vector<8xf32> to vector<8x1xf32>
    %37 = vector.broadcast %36 : vector<8x1xf32> to vector<8x8xf32>
    %38 = arith.subf %34, %37 : vector<8x8xf32>
    %39 = math.exp %38 : vector<8x8xf32>
    %cst_11 = arith.constant dense<0.000000e+00> : vector<8xf32>
    %40 = vector.multi_reduction <add>, %39, %cst_11 [1] : vector<8x8xf32> to vector<8xf32>
    %41 = vector.shape_cast %40 : vector<8xf32> to vector<8x1xf32>
    %42 = tpu.reciprocal %41 {approx = true} : vector<8x1xf32> -> vector<8x1xf32>
    %43 = vector.broadcast %42 : vector<8x1xf32> to vector<8x8xf32>
    %44 = arith.mulf %39, %43 : vector<8x8xf32>
    %c0_12 = arith.constant 0 : index
    %c0_13 = arith.constant 0 : index
    %c0_14 = arith.constant 0 : index
    %c0_15 = arith.constant 0 : index
    %45 = vector.load %arg20[%c0_12, %c0_13, %c0_14, %c0_15] : memref<1x1x8x8xf32, #tpu.memory_space<vmem>>, vector<1x1x8x8xf32>
    %46 = vector.shape_cast %45 : vector<1x1x8x8xf32> to vector<8x8xf32>
    %47 = vector.shape_cast %44 : vector<8x8xf32> to vector<1x1x8x8xf32>
    tpu.vector_store %arg20[%c0_12, %c0_13, %c0_14, %c0_15], %47 {strides = array<i32>} : memref<1x1x8x8xf32, #tpu.memory_space<vmem>>, vector<1x1x8x8xf32>,
    %48 = arith.truncf %44 : vector<8x8xf32> to vector<8x8xbf16>
    %cst_16 = arith.constant dense<0.000000e+00> : vector<8x8xf32>
    %49 = tpu.matmul %48, %16, %cst_16 {dimension_numbers = #tpu.dot_dimension_numbers<[1], [0], [0], [1], [0, 0, 1, 1], [], []>} : vector<8x8xbf16>, vector<8x8xbf16>, vector<8x8xf32> -> vector<8x8xf32>
    %c8_i32 = arith.constant 8 : i32
    %50 = arith.muli %arg1, %c8_i32 : i32
    %51 = tpu.assume_multiple %50, 8 : i32
    %52 = arith.index_cast %51 : i32 to index
    %c0_17 = arith.constant 0 : index
    %53 = vector.load %arg13[%52, %c0_17] : memref<32x32xf32, #tpu.memory_space<vmem>>, vector<8x32xf32>
    %54 = arith.truncf %53 : vector<8x32xf32> to vector<8x32xbf16>
    %c0_18 = arith.constant 0 : index
    %c0_19 = arith.constant 0 : index
    %55 = vector.load %arg24[%c0_18, %c0_19] : memref<8x32xf32, #tpu.memory_space<vmem>>, vector<8x32xf32>
    %56 = arith.truncf %49 : vector<8x8xf32> to vector<8x8xbf16>
    %cst_20 = arith.constant dense<0.000000e+00> : vector<8x32xf32>
    %57 = tpu.matmul %56, %54, %cst_20 {dimension_numbers = #tpu.dot_dimension_numbers<[1], [0], [0], [1], [0, 0, 1, 1], [], []>} : vector<8x8xbf16>, vector<8x32xbf16>, vector<8x32xf32> -> vector<8x32xf32>
    %58 = arith.addf %55, %57 : vector<8x32xf32>
    %c0_21 = arith.constant 0 : index
    %c0_22 = arith.constant 0 : index
    %59 = vector.load %arg24[%c0_21, %c0_22] : memref<8x32xf32, #tpu.memory_space<vmem>>, vector<8x32xf32>
    tpu.vector_store %arg24[%c0_21, %c0_22], %58 {strides = array<i32>} : memref<8x32xf32, #tpu.memory_space<vmem>>, vector<8x32xf32>,
    %c3_i32 = arith.constant 3 : i32
    %60 = arith.cmpi eq, %arg1, %c3_i32 : i32
    %61 = arith.extui %60 : i1 to i32
    %c0_i32_23 = arith.constant 0 : i32
    %62 = arith.cmpi ne, %61, %c0_i32_23 : i32
    scf.if %62 {
      %c0_24 = arith.constant 0 : index
      %c0_25 = arith.constant 0 : index
      %c0_26 = arith.constant 0 : index
      %63 = vector.load %arg2[%c0_24, %c0_25, %c0_26] : memref<1x8x32xf32, #tpu.memory_space<vmem>>, vector<1x8x32xf32>
      %64 = vector.shape_cast %63 : vector<1x8x32xf32> to vector<8x32xf32>
      %c0_27 = arith.constant 0 : index
      %c0_28 = arith.constant 0 : index
      %65 = vector.load %arg24[%c0_27, %c0_28] : memref<8x32xf32, #tpu.memory_space<vmem>>, vector<8x32xf32>
      %66 = arith.addf %64, %65 : vector<8x32xf32>
      %c0_29 = arith.constant 0 : index
      %c0_30 = arith.constant 0 : index
      %67 = vector.load %arg14[%c0_29, %c0_30] : memref<1x32xf32, #tpu.memory_space<vmem>>, vector<1x32xf32>
      %68 = vector.shape_cast %67 : vector<1x32xf32> to vector<32xf32>
      %69 = vector.shape_cast %68 : vector<32xf32> to vector<1x32xf32>
      %70 = vector.broadcast %69 : vector<1x32xf32> to vector<8x32xf32>
      %71 = arith.addf %66, %70 : vector<8x32xf32>
      %c0_31 = arith.constant 0 : index
      %c0_32 = arith.constant 0 : index
      %72 = vector.load %arg5[%c0_31, %c0_32] : memref<1x32xf32, #tpu.memory_space<vmem>>, vector<1x32xf32>
      %73 = vector.shape_cast %72 : vector<1x32xf32> to vector<32xf32>
      %c0_33 = arith.constant 0 : index
      %c0_34 = arith.constant 0 : index
      %74 = vector.load %arg6[%c0_33, %c0_34] : memref<1x32xf32, #tpu.memory_space<vmem>>, vector<1x32xf32>
      %75 = vector.shape_cast %74 : vector<1x32xf32> to vector<32xf32>
      %cst_35 = arith.constant dense<0.000000e+00> : vector<8xf32>
      %76 = vector.multi_reduction <add>, %71, %cst_35 [1] : vector<8x32xf32> to vector<8xf32>
      %77 = vector.shape_cast %76 : vector<8xf32> to vector<8x1xf32>
      %cst_36 = arith.constant 3.200000e+01 : f32
      %78 = vector.broadcast %cst_36 : f32 to vector<8x1xf32>
      %79 = arith.divf %77, %78 : vector<8x1xf32>
      %80 = vector.broadcast %79 : vector<8x1xf32> to vector<8x32xf32>
      %81 = arith.subf %71, %80 : vector<8x32xf32>
      %82 = arith.mulf %81, %81 : vector<8x32xf32>
      %cst_37 = arith.constant dense<0.000000e+00> : vector<8xf32>
      %83 = vector.multi_reduction <add>, %82, %cst_37 [1] : vector<8x32xf32> to vector<8xf32>
      %84 = vector.shape_cast %83 : vector<8xf32> to vector<8x1xf32>
      %cst_38 = arith.constant 3.200000e+01 : f32
      %85 = vector.broadcast %cst_38 : f32 to vector<8x1xf32>
      %86 = arith.divf %84, %85 : vector<8x1xf32>
      %87 = vector.broadcast %79 : vector<8x1xf32> to vector<8x32xf32>
      %88 = arith.subf %71, %87 : vector<8x32xf32>
      %cst_39 = arith.constant 9.99999974E-6 : f32
      %89 = vector.broadcast %cst_39 : f32 to vector<8x1xf32>
      %90 = arith.addf %86, %89 : vector<8x1xf32>
      %91 = math.rsqrt %90 : vector<8x1xf32>
      %92 = vector.broadcast %91 : vector<8x1xf32> to vector<8x32xf32>
      %93 = arith.mulf %88, %92 : vector<8x32xf32>
      %94 = vector.shape_cast %73 : vector<32xf32> to vector<1x32xf32>
      %95 = vector.broadcast %94 : vector<1x32xf32> to vector<8x32xf32>
      %96 = arith.mulf %93, %95 : vector<8x32xf32>
      %97 = vector.shape_cast %75 : vector<32xf32> to vector<1x32xf32>
      %98 = vector.broadcast %97 : vector<1x32xf32> to vector<8x32xf32>
      %99 = arith.addf %96, %98 : vector<8x32xf32>
      %100 = arith.truncf %99 : vector<8x32xf32> to vector<8x32xbf16>
      %c0_40 = arith.constant 0 : index
      %c0_41 = arith.constant 0 : index
      %101 = vector.load %arg15[%c0_40, %c0_41] : memref<32x128xf32, #tpu.memory_space<vmem>>, vector<32x128xf32>
      %102 = arith.truncf %101 : vector<32x128xf32> to vector<32x128xbf16>
      %cst_42 = arith.constant dense<0.000000e+00> : vector<8x128xf32>
      %103 = tpu.matmul %100, %102, %cst_42 {dimension_numbers = #tpu.dot_dimension_numbers<[1], [0], [0], [1], [0, 0, 1, 1], [], []>} : vector<8x32xbf16>, vector<32x128xbf16>, vector<8x128xf32> -> vector<8x128xf32>
      %c0_43 = arith.constant 0 : index
      %c0_44 = arith.constant 0 : index
      %104 = vector.load %arg16[%c0_43, %c0_44] : memref<1x128xf32, #tpu.memory_space<vmem>>, vector<1x128xf32>
      %105 = vector.shape_cast %104 : vector<1x128xf32> to vector<128xf32>
      %106 = vector.shape_cast %105 : vector<128xf32> to vector<1x128xf32>
      %107 = vector.broadcast %106 : vector<1x128xf32> to vector<8x128xf32>
      %108 = arith.addf %103, %107 : vector<8x128xf32>
      %cst_45 = arith.constant 0.000000e+00 : f32
      %109 = vector.broadcast %cst_45 : f32 to vector<8x128xf32>
      %110 = arith.maximumf %108, %109 : vector<8x128xf32>
      %111 = arith.truncf %110 : vector<8x128xf32> to vector<8x128xbf16>
      %c0_46 = arith.constant 0 : index
      %c0_47 = arith.constant 0 : index
      %112 = vector.load %arg17[%c0_46, %c0_47] : memref<128x32xf32, #tpu.memory_space<vmem>>, vector<128x32xf32>
      %113 = arith.truncf %112 : vector<128x32xf32> to vector<128x32xbf16>
      %cst_48 = arith.constant dense<0.000000e+00> : vector<8x32xf32>
      %114 = tpu.matmul %111, %113, %cst_48 {dimension_numbers = #tpu.dot_dimension_numbers<[1], [0], [0], [1], [0, 0, 1, 1], [], []>} : vector<8x128xbf16>, vector<128x32xbf16>, vector<8x32xf32> -> vector<8x32xf32>
      %c0_49 = arith.constant 0 : index
      %c0_50 = arith.constant 0 : index
      %115 = vector.load %arg18[%c0_49, %c0_50] : memref<1x32xf32, #tpu.memory_space<vmem>>, vector<1x32xf32>
      %116 = vector.shape_cast %115 : vector<1x32xf32> to vector<32xf32>
      %117 = vector.shape_cast %116 : vector<32xf32> to vector<1x32xf32>
      %118 = vector.broadcast %117 : vector<1x32xf32> to vector<8x32xf32>
      %119 = arith.addf %114, %118 : vector<8x32xf32>
      %120 = arith.addf %71, %119 : vector<8x32xf32>
      %c0_51 = arith.constant 0 : index
      %c0_52 = arith.constant 0 : index
      %c0_53 = arith.constant 0 : index
      %121 = vector.load %arg19[%c0_51, %c0_52, %c0_53] : memref<1x8x32xf32, #tpu.memory_space<vmem>>, vector<1x8x32xf32>
      %122 = vector.shape_cast %121 : vector<1x8x32xf32> to vector<8x32xf32>
      %123 = vector.shape_cast %120 : vector<8x32xf32> to vector<1x8x32xf32>
      tpu.vector_store %arg19[%c0_51, %c0_52, %c0_53], %123 {strides = array<i32>} : memref<1x8x32xf32, #tpu.memory_space<vmem>>, vector<1x8x32xf32>,
    } else {
    }
    return
  }
  func.func @transform_0(%arg0: i32, %arg1: i32) -> (i32, i32, i32) {
    %c0_i32 = arith.constant 0 : i32
    %c0_i32_0 = arith.constant 0 : i32
    %c0_i32_1 = arith.constant 0 : i32
    return %arg0, %c0_i32, %c0_i32_0 : i32, i32, i32
  }
  func.func @transform_1(%arg0: i32, %arg1: i32) -> (i32, i32) {
    %c0_i32 = arith.constant 0 : i32
    %c0_i32_0 = arith.constant 0 : i32
    %c0_i32_1 = arith.constant 0 : i32
    return %c0_i32, %c0_i32_0 : i32, i32
  }
  func.func @transform_2(%arg0: i32, %arg1: i32) -> (i32, i32) {
    %c0_i32 = arith.constant 0 : i32
    %c0_i32_0 = arith.constant 0 : i32
    %c0_i32_1 = arith.constant 0 : i32
    return %c0_i32, %c0_i32_0 : i32, i32
  }
  func.func @transform_3(%arg0: i32, %arg1: i32) -> (i32, i32) {
    %c0_i32 = arith.constant 0 : i32
    %c0_i32_0 = arith.constant 0 : i32
    %c0_i32_1 = arith.constant 0 : i32
    return %c0_i32, %c0_i32_0 : i32, i32
  }
  func.func @transform_4(%arg0: i32, %arg1: i32) -> (i32, i32) {
    %c0_i32 = arith.constant 0 : i32
    %c0_i32_0 = arith.constant 0 : i32
    %c0_i32_1 = arith.constant 0 : i32
    return %c0_i32, %c0_i32_0 : i32, i32
  }
  func.func @transform_5(%arg0: i32, %arg1: i32) -> (i32, i32) {
    %c0_i32 = arith.constant 0 : i32
    %c0_i32_0 = arith.constant 0 : i32
    %c0_i32_1 = arith.constant 0 : i32
    return %c0_i32, %c0_i32_0 : i32, i32
  }
  func.func @transform_6(%arg0: i32, %arg1: i32) -> (i32, i32) {
    %c0_i32 = arith.constant 0 : i32
    %c0_i32_0 = arith.constant 0 : i32
    %c0_i32_1 = arith.constant 0 : i32
    return %c0_i32, %c0_i32_0 : i32, i32
  }
  func.func @transform_7(%arg0: i32, %arg1: i32) -> (i32, i32) {
    %c0_i32 = arith.constant 0 : i32
    %c0_i32_0 = arith.constant 0 : i32
    %c0_i32_1 = arith.constant 0 : i32
    return %c0_i32, %c0_i32_0 : i32, i32
  }
  func.func @transform_8(%arg0: i32, %arg1: i32) -> (i32, i32) {
    %c0_i32 = arith.constant 0 : i32
    %c0_i32_0 = arith.constant 0 : i32
    %c0_i32_1 = arith.constant 0 : i32
    return %c0_i32, %c0_i32_0 : i32, i32
  }
  func.func @transform_9(%arg0: i32, %arg1: i32) -> (i32, i32) {
    %c0_i32 = arith.constant 0 : i32
    %c0_i32_0 = arith.constant 0 : i32
    %c0_i32_1 = arith.constant 0 : i32
    return %c0_i32, %c0_i32_0 : i32, i32
  }
  func.func @transform_10(%arg0: i32, %arg1: i32) -> (i32, i32) {
    %c0_i32 = arith.constant 0 : i32
    %c0_i32_0 = arith.constant 0 : i32
    %c0_i32_1 = arith.constant 0 : i32
    return %c0_i32, %c0_i32_0 : i32, i32
  }
  func.func @transform_11(%arg0: i32, %arg1: i32) -> (i32, i32) {
    %c0_i32 = arith.constant 0 : i32
    %c0_i32_0 = arith.constant 0 : i32
    %c0_i32_1 = arith.constant 0 : i32
    return %c0_i32, %c0_i32_0 : i32, i32
  }
  func.func @transform_12(%arg0: i32, %arg1: i32) -> (i32, i32) {
    %c0_i32 = arith.constant 0 : i32
    %c0_i32_0 = arith.constant 0 : i32
    %c0_i32_1 = arith.constant 0 : i32
    return %c0_i32, %c0_i32_0 : i32, i32
  }
  func.func @transform_13(%arg0: i32, %arg1: i32) -> (i32, i32) {
    %c0_i32 = arith.constant 0 : i32
    %c0_i32_0 = arith.constant 0 : i32
    %c0_i32_1 = arith.constant 0 : i32
    return %c0_i32, %c0_i32_0 : i32, i32
  }
  func.func @transform_14(%arg0: i32, %arg1: i32) -> (i32, i32) {
    %c0_i32 = arith.constant 0 : i32
    %c0_i32_0 = arith.constant 0 : i32
    %c0_i32_1 = arith.constant 0 : i32
    return %c0_i32, %c0_i32_0 : i32, i32
  }
  func.func @transform_15(%arg0: i32, %arg1: i32) -> (i32, i32) {
    %c0_i32 = arith.constant 0 : i32
    %c0_i32_0 = arith.constant 0 : i32
    %c0_i32_1 = arith.constant 0 : i32
    return %c0_i32, %c0_i32_0 : i32, i32
  }
  func.func @transform_16(%arg0: i32, %arg1: i32) -> (i32, i32) {
    %c0_i32 = arith.constant 0 : i32
    %c0_i32_0 = arith.constant 0 : i32
    %c0_i32_1 = arith.constant 0 : i32
    return %c0_i32, %c0_i32_0 : i32, i32
  }
  func.func @transform_17(%arg0: i32, %arg1: i32) -> (i32, i32, i32) {
    %c0_i32 = arith.constant 0 : i32
    %c0_i32_0 = arith.constant 0 : i32
    %c0_i32_1 = arith.constant 0 : i32
    return %arg0, %c0_i32, %c0_i32_0 : i32, i32, i32
  }
  func.func @transform_18(%arg0: i32, %arg1: i32) -> (i32, i32, i32, i32) {
    %c0_i32 = arith.constant 0 : i32
    %c0_i32_0 = arith.constant 0 : i32
    %c0_i32_1 = arith.constant 0 : i32
    return %arg0, %arg1, %c0_i32, %c0_i32_0 : i32, i32, i32, i32
  }
}

</mosaic_0001>

<llo_original>
// kernel: tpu_custom_call.1
$region0: #{tpu_custom_call.1}
  #allocation0 [shape = 'u32[]', space=smem, size = 0x4, offset = 0x4, fixed_abs, tag = 'smem constant byte address 0x4 - core index']
  #allocation1 [shape = 'u32[144,128]{1,0:T(1,128)}', space=vmem, size = 0x12000, scoped, tag = 'internal scratch']
  #allocation2 [shape = 'f32[4,8,8]{2,1,0:T(8,128)}', space=vmem, size = 0x4000, scoped, tag = 'scratch operand']
  #allocation3 [shape = 'f32[4,8,8]{2,1,0:T(8,128)}', space=vmem, size = 0x4000, scoped, tag = 'scratch operand']
  #allocation4 [shape = 'f32[4,8,8]{2,1,0:T(8,128)}', space=vmem, size = 0x4000, scoped, tag = 'scratch operand']
  #allocation5 [shape = 'f32[8,32]{1,0:T(8,128)}', space=vmem, size = 0x1000, scoped, tag = 'scratch operand']
  %s0 = inlined_call_operand.hbm [shape: f32[2,8,32], index: 0, kind: input, shape index: {}]
  %s1 = inlined_call_operand.vmem [shape: f32[1,32], index: 1, kind: input, shape index: {}]
  %s2 = inlined_call_operand.vmem [shape: f32[1,32], index: 2, kind: input, shape index: {}]
  %s3 = inlined_call_operand.vmem [shape: f32[1,32], index: 3, kind: input, shape index: {}]
  %s4 = inlined_call_operand.vmem [shape: f32[1,32], index: 4, kind: input, shape index: {}]
  %s5 = inlined_call_operand.vmem [shape: f32[32,32], index: 5, kind: input, shape index: {}]
  %s6 = inlined_call_operand.vmem [shape: f32[1,32], index: 6, kind: input, shape index: {}]
  %s7 = inlined_call_operand.vmem [shape: f32[32,32], index: 7, kind: input, shape index: {}]
  %s8 = inlined_call_operand.vmem [shape: f32[1,32], index: 8, kind: input, shape index: {}]
  %s9 = inlined_call_operand.vmem [shape: f32[32,32], index: 9, kind: input, shape index: {}]
  %s10 = inlined_call_operand.vmem [shape: f32[1,32], index: 10, kind: input, shape index: {}]
  %s11 = inlined_call_operand.vmem [shape: f32[32,32], index: 11, kind: input, shape index: {}]
  %s12 = inlined_call_operand.vmem [shape: f32[1,32], index: 12, kind: input, shape index: {}]
  %s13 = inlined_call_operand.vmem [shape: f32[32,128], index: 13, kind: input, shape index: {}]
  %s14 = inlined_call_operand.vmem [shape: f32[1,128], index: 14, kind: input, shape index: {}]
  %s15 = inlined_call_operand.vmem [shape: f32[128,32], index: 15, kind: input, shape index: {}]
  %s16 = inlined_call_operand.vmem [shape: f32[1,32], index: 16, kind: input, shape index: {}]
  %s17 = inlined_call_operand.hbm [shape: f32[2,8,32], index: 17, kind: output, shape index: {0}]
  %s18 = inlined_call_operand.hbm [shape: f32[2,4,8,8], index: 18, kind: output, shape index: {1}]
  %19 = xla_tuple %s17, %s18
  %s20 = sld [smem:[#allocation0]]
  $region121: #{tpu_custom_call.1} parent=0
    _
  %s22 = ssub.s32 1, %s20
  %s23 = scalar_select 0, %s22, %s20
  $region1: #{tpu_custom_call.1} parent=0
    #allocation6 [shape = 'u8[8192]{0}', space=vmem, size = 0x2000, scoped, tag = 'input window, operand 0']
    #allocation7 [shape = 's32[2]{0}', space=sflag, size = 0x8, scoped, tag = 'scoped memory for tpu_custom_call.1']
    #allocation8 [shape = 's32[2]{0}', space=sflag, size = 0x8, scoped, tag = 'scoped memory for tpu_custom_call.1']
    #allocation9 [shape = 'u8[8192]{0}', space=vmem, size = 0x2000, scoped, tag = 'output window, operand 0']
    #allocation10 [shape = 'u8[8192]{0}', space=vmem, size = 0x2000, scoped, tag = 'output window, operand 1']
    #allocation11 [shape = 's32[2]{0}', space=sflag, size = 0x8, scoped, tag = 'scoped memory for tpu_custom_call.1']
    %24 = vsyncpa [#allocation7], 0
    %s25 = scalar_lea.sflag [#allocation7], 1
    %26 = vsyncpa %s25, 0
    %27 = vsyncpa [#allocation8], 0
    %s28 = scalar_lea.sflag [#allocation8], 1
    %29 = vsyncpa %s28, 0
    %30 = vsyncpa [#allocation11], 0
    %s31 = scalar_lea.sflag [#allocation11], 1
    %32 = vsyncpa %s31, 0
    loop: start=0, step=1, limit=10
    $region2: #{tpu_custom_call.1} parent=1 // loop_pre_header
      _
    $region3: #{tpu_custom_call.1} parent=1 // loop_header
      %s34 = sphi 0, %s38
      %p35 = scmp.ge.s32.totalorder %s34, 10
      %s41 = sphi 0, %s53
      %s42 = sphi 0, %s49
      %s43 = sphi 0, %s41
      %s44 = sphi 0, %s42
      %s45 = sphi 0, %s43
      %s46 = sphi 0, %s44
      %s56 = sphi 0, %s58
      %s59 = sphi 0, %s56
      %s60 = sphi 0, %s59
      %s76 = sphi 0, %s60
      %s80 = sphi 0, %s80
      %s82 = sphi 0, %s80
      %s83 = sphi 0, %s82
      %s97 = sphi 0, %s83
      %s101 = sphi 0, %s101
      %s103 = sphi 0, %s101
      %s104 = sphi 0, %s103
      %s118 = sphi 0, %s104
      %s122 = sphi 0, %s122
      %s124 = sphi 0, %s122
      %s125 = sphi 0, %s124
      %s139 = sphi 0, %s125
      %s143 = sphi 0, %s143
      %s145 = sphi 0, %s143
      %s146 = sphi 0, %s145
      %s160 = sphi 0, %s146
      %s164 = sphi 0, %s164
      %s166 = sphi 0, %s164
      %s167 = sphi 0, %s166
      %s181 = sphi 0, %s167
      %s185 = sphi 0, %s185
      %s187 = sphi 0, %s185
      %s188 = sphi 0, %s187
      %s202 = sphi 0, %s188
      %s206 = sphi 0, %s206
      %s208 = sphi 0, %s206
      %s209 = sphi 0, %s208
      %s223 = sphi 0, %s209
      %s227 = sphi 0, %s227
      %s229 = sphi 0, %s227
      %s230 = sphi 0, %s229
      %s244 = sphi 0, %s230
      %s248 = sphi 0, %s248
      %s250 = sphi 0, %s248
      %s251 = sphi 0, %s250
      %s265 = sphi 0, %s251
      %s269 = sphi 0, %s269
      %s271 = sphi 0, %s269
      %s272 = sphi 0, %s271
      %s286 = sphi 0, %s272
      %s290 = sphi 0, %s290
      %s292 = sphi 0, %s290
      %s293 = sphi 0, %s292
      %s307 = sphi 0, %s293
      %s311 = sphi 0, %s311
      %s313 = sphi 0, %s311
      %s314 = sphi 0, %s313
      %s328 = sphi 0, %s314
      %s332 = sphi 0, %s332
      %s334 = sphi 0, %s332
      %s335 = sphi 0, %s334
      %s349 = sphi 0, %s335
      %s353 = sphi 0, %s353
      %s355 = sphi 0, %s353
      %s356 = sphi 0, %s355
      %s370 = sphi 0, %s356
      %s374 = sphi 0, %s374
      %s376 = sphi 0, %s374
      %s377 = sphi 0, %s376
      %s391 = sphi 0, %s377
      %s395 = sphi 0, %s395
      %s397 = sphi 0, %s395
      %s398 = sphi 0, %s397
      %s412 = sphi 0, %s398
      %s418 = sphi 0, %s420
      %s421 = sphi 0, %s418
      %s422 = sphi 0, %s421
      %s438 = sphi 0, %s422
      %s446 = sphi 0, %s448
      %s449 = sphi 0, %s446
      %s450 = sphi 0, %s449
      %s466 = sphi 0, %s450
    $region4: #{tpu_custom_call.1} parent=1 // loop_header_branch
      %37 = sbr.rel (%p35) target = $region8
    $region5: #{tpu_custom_call.1} parent=1 // loop_body
      %s39 = ssub.s32 %s34, 1
      %s40 = ssub.s32 %s34, 2
      %s47 = sadd.s32 1, %s42
      %p48 = scmp.ge.s32.totalorder %s47, 4
      %s49 = scalar_select %p48, 0, %s47
      %s50 = sadd.s32 1, %s41
      %s51 = scalar_select %p48, %s50, %s41
      %p52 = scmp.ge.s32.totalorder %s51, 2
      %s53 = scalar_select %p52, 0, %s51
      %s54 = ssub.s32 %s41, %s53
      %p55 = scmp.eq.s32.totalorder %s54, 0
      %s57 = sadd.s32 %s56, 1
      %s58 = scalar_select %p55, %s56, %s57
      %p61 = pneg %p55
      %p62 = scmp.eq.s32.totalorder %s34, 7
      %p63 = por %p61, %p62
      %p64 = scmp.ne.s32.totalorder %s56, %s59
      %p65 = scmp.eq.s32.totalorder %s34, 0
      %p66 = por %p64, %p65
      %p67 = scmp.ne.s32.totalorder %s56, %s59
      %p68 = scmp.eq.s32.totalorder %s39, 7
      %p69 = por %p67, %p68
      %p70 = scmp.ne.s32.totalorder %s59, %s60
      %p71 = scmp.eq.s32.totalorder %s39, 0
      %p72 = por %p70, %p71
      %p73 = scmp.ne.s32.totalorder %s59, %s60
      %p74 = scmp.eq.s32.totalorder %s40, 7
      %p75 = por %p73, %p74
      %p77 = scmp.ne.s32.totalorder %s60, %s76
      %p78 = scmp.eq.s32.totalorder %s40, 0
      %p79 = por %p77, %p78
      %s81 = sadd.s32 %s80, 1
      %p84 = scmp.eq.s32.totalorder %s34, 7
      %p85 = scmp.ne.s32.totalorder %s80, %s82
      %p86 = scmp.eq.s32.totalorder %s34, 0
      %p87 = por %p85, %p86
      %p88 = scmp.ne.s32.totalorder %s80, %s82
      %p89 = scmp.eq.s32.totalorder %s39, 7
      %p90 = por %p88, %p89
      %p91 = scmp.ne.s32.totalorder %s82, %s83
      %p92 = scmp.eq.s32.totalorder %s39, 0
      %p93 = por %p91, %p92
      %p94 = scmp.ne.s32.totalorder %s82, %s83
      %p95 = scmp.eq.s32.totalorder %s40, 7
      %p96 = por %p94, %p95
      %p98 = scmp.ne.s32.totalorder %s83, %s97
      %p99 = scmp.eq.s32.totalorder %s40, 0
      %p100 = por %p98, %p99
      %s102 = sadd.s32 %s101, 1
      %p105 = scmp.eq.s32.totalorder %s34, 7
      %p106 = scmp.ne.s32.totalorder %s101, %s103
      %p107 = scmp.eq.s32.totalorder %s34, 0
      %p108 = por %p106, %p107
      %p109 = scmp.ne.s32.totalorder %s101, %s103
      %p110 = scmp.eq.s32.totalorder %s39, 7
      %p111 = por %p109, %p110
      %p112 = scmp.ne.s32.totalorder %s103, %s104
      %p113 = scmp.eq.s32.totalorder %s39, 0
      %p114 = por %p112, %p113
      %p115 = scmp.ne.s32.totalorder %s103, %s104
      %p116 = scmp.eq.s32.totalorder %s40, 7
      %p117 = por %p115, %p116
      %p119 = scmp.ne.s32.totalorder %s104, %s118
      %p120 = scmp.eq.s32.totalorder %s40, 0
      %p121 = por %p119, %p120
      %s123 = sadd.s32 %s122, 1
      %p126 = scmp.eq.s32.totalorder %s34, 7
      %p127 = scmp.ne.s32.totalorder %s122, %s124
      %p128 = scmp.eq.s32.totalorder %s34, 0
      %p129 = por %p127, %p128
      %p130 = scmp.ne.s32.totalorder %s122, %s124
      %p131 = scmp.eq.s32.totalorder %s39, 7
      %p132 = por %p130, %p131
      %p133 = scmp.ne.s32.totalorder %s124, %s125
      %p134 = scmp.eq.s32.totalorder %s39, 0
      %p135 = por %p133, %p134
      %p136 = scmp.ne.s32.totalorder %s124, %s125
      %p137 = scmp.eq.s32.totalorder %s40, 7
      %p138 = por %p136, %p137
      %p140 = scmp.ne.s32.totalorder %s125, %s139
      %p141 = scmp.eq.s32.totalorder %s40, 0
      %p142 = por %p140, %p141
      %s144 = sadd.s32 %s143, 1
      %p147 = scmp.eq.s32.totalorder %s34, 7
      %p148 = scmp.ne.s32.totalorder %s143, %s145
      %p149 = scmp.eq.s32.totalorder %s34, 0
      %p150 = por %p148, %p149
      %p151 = scmp.ne.s32.totalorder %s143, %s145
      %p152 = scmp.eq.s32.totalorder %s39, 7
      %p153 = por %p151, %p152
      %p154 = scmp.ne.s32.totalorder %s145, %s146
      %p155 = scmp.eq.s32.totalorder %s39, 0
      %p156 = por %p154, %p155
      %p157 = scmp.ne.s32.totalorder %s145, %s146
      %p158 = scmp.eq.s32.totalorder %s40, 7
      %p159 = por %p157, %p158
      %p161 = scmp.ne.s32.totalorder %s146, %s160
      %p162 = scmp.eq.s32.totalorder %s40, 0
      %p163 = por %p161, %p162
      %s165 = sadd.s32 %s164, 1
      %p168 = scmp.eq.s32.totalorder %s34, 7
      %p169 = scmp.ne.s32.totalorder %s164, %s166
      %p170 = scmp.eq.s32.totalorder %s34, 0
      %p171 = por %p169, %p170
      %p172 = scmp.ne.s32.totalorder %s164, %s166
      %p173 = scmp.eq.s32.totalorder %s39, 7
      %p174 = por %p172, %p173
      %p175 = scmp.ne.s32.totalorder %s166, %s167
      %p176 = scmp.eq.s32.totalorder %s39, 0
      %p177 = por %p175, %p176
      %p178 = scmp.ne.s32.totalorder %s166, %s167
      %p179 = scmp.eq.s32.totalorder %s40, 7
      %p180 = por %p178, %p179
      %p182 = scmp.ne.s32.totalorder %s167, %s181
      %p183 = scmp.eq.s32.totalorder %s40, 0
      %p184 = por %p182, %p183
      %s186 = sadd.s32 %s185, 1
      %p189 = scmp.eq.s32.totalorder %s34, 7
      %p190 = scmp.ne.s32.totalorder %s185, %s187
      %p191 = scmp.eq.s32.totalorder %s34, 0
      %p192 = por %p190, %p191
      %p193 = scmp.ne.s32.totalorder %s185, %s187
      %p194 = scmp.eq.s32.totalorder %s39, 7
      %p195 = por %p193, %p194
      %p196 = scmp.ne.s32.totalorder %s187, %s188
      %p197 = scmp.eq.s32.totalorder %s39, 0
      %p198 = por %p196, %p197
      %p199 = scmp.ne.s32.totalorder %s187, %s188
      %p200 = scmp.eq.s32.totalorder %s40, 7
      %p201 = por %p199, %p200
      %p203 = scmp.ne.s32.totalorder %s188, %s202
      %p204 = scmp.eq.s32.totalorder %s40, 0
      %p205 = por %p203, %p204
      %s207 = sadd.s32 %s206, 1
      %p210 = scmp.eq.s32.totalorder %s34, 7
      %p211 = scmp.ne.s32.totalorder %s206, %s208
      %p212 = scmp.eq.s32.totalorder %s34, 0
      %p213 = por %p211, %p212
      %p214 = scmp.ne.s32.totalorder %s206, %s208
      %p215 = scmp.eq.s32.totalorder %s39, 7
      %p216 = por %p214, %p215
      %p217 = scmp.ne.s32.totalorder %s208, %s209
      %p218 = scmp.eq.s32.totalorder %s39, 0
      %p219 = por %p217, %p218
      %p220 = scmp.ne.s32.totalorder %s208, %s209
      %p221 = scmp.eq.s32.totalorder %s40, 7
      %p222 = por %p220, %p221
      %p224 = scmp.ne.s32.totalorder %s209, %s223
      %p225 = scmp.eq.s32.totalorder %s40, 0
      %p226 = por %p224, %p225
      %s228 = sadd.s32 %s227, 1
      %p231 = scmp.eq.s32.totalorder %s34, 7
      %p232 = scmp.ne.s32.totalorder %s227, %s229
      %p233 = scmp.eq.s32.totalorder %s34, 0
      %p234 = por %p232, %p233
      %p235 = scmp.ne.s32.totalorder %s227, %s229
      %p236 = scmp.eq.s32.totalorder %s39, 7
      %p237 = por %p235, %p236
      %p238 = scmp.ne.s32.totalorder %s229, %s230
      %p239 = scmp.eq.s32.totalorder %s39, 0
      %p240 = por %p238, %p239
      %p241 = scmp.ne.s32.totalorder %s229, %s230
      %p242 = scmp.eq.s32.totalorder %s40, 7
      %p243 = por %p241, %p242
      %p245 = scmp.ne.s32.totalorder %s230, %s244
      %p246 = scmp.eq.s32.totalorder %s40, 0
      %p247 = por %p245, %p246
      %s249 = sadd.s32 %s248, 1
      %p252 = scmp.eq.s32.totalorder %s34, 7
      %p253 = scmp.ne.s32.totalorder %s248, %s250
      %p254 = scmp.eq.s32.totalorder %s34, 0
      %p255 = por %p253, %p254
      %p256 = scmp.ne.s32.totalorder %s248, %s250
      %p257 = scmp.eq.s32.totalorder %s39, 7
      %p258 = por %p256, %p257
      %p259 = scmp.ne.s32.totalorder %s250, %s251
      %p260 = scmp.eq.s32.totalorder %s39, 0
      %p261 = por %p259, %p260
      %p262 = scmp.ne.s32.totalorder %s250, %s251
      %p263 = scmp.eq.s32.totalorder %s40, 7
      %p264 = por %p262, %p263
      %p266 = scmp.ne.s32.totalorder %s251, %s265
      %p267 = scmp.eq.s32.totalorder %s40, 0
      %p268 = por %p266, %p267
      %s270 = sadd.s32 %s269, 1
      %p273 = scmp.eq.s32.totalorder %s34, 7
      %p274 = scmp.ne.s32.totalorder %s269, %s271
      %p275 = scmp.eq.s32.totalorder %s34, 0
      %p276 = por %p274, %p275
      %p277 = scmp.ne.s32.totalorder %s269, %s271
      %p278 = scmp.eq.s32.totalorder %s39, 7
      %p279 = por %p277, %p278
      %p280 = scmp.ne.s32.totalorder %s271, %s272
      %p281 = scmp.eq.s32.totalorder %s39, 0
      %p282 = por %p280, %p281
      %p283 = scmp.ne.s32.totalorder %s271, %s272
      %p284 = scmp.eq.s32.totalorder %s40, 7
      %p285 = por %p283, %p284
      %p287 = scmp.ne.s32.totalorder %s272, %s286
      %p288 = scmp.eq.s32.totalorder %s40, 0
      %p289 = por %p287, %p288
      %s291 = sadd.s32 %s290, 1
      %p294 = scmp.eq.s32.totalorder %s34, 7
      %p295 = scmp.ne.s32.totalorder %s290, %s292
      %p296 = scmp.eq.s32.totalorder %s34, 0
      %p297 = por %p295, %p296
      %p298 = scmp.ne.s32.totalorder %s290, %s292
      %p299 = scmp.eq.s32.totalorder %s39, 7
      %p300 = por %p298, %p299
      %p301 = scmp.ne.s32.totalorder %s292, %s293
      %p302 = scmp.eq.s32.totalorder %s39, 0
      %p303 = por %p301, %p302
      %p304 = scmp.ne.s32.totalorder %s292, %s293
      %p305 = scmp.eq.s32.totalorder %s40, 7
      %p306 = por %p304, %p305
      %p308 = scmp.ne.s32.totalorder %s293, %s307
      %p309 = scmp.eq.s32.totalorder %s40, 0
      %p310 = por %p308, %p309
      %s312 = sadd.s32 %s311, 1
      %p315 = scmp.eq.s32.totalorder %s34, 7
      %p316 = scmp.ne.s32.totalorder %s311, %s313
      %p317 = scmp.eq.s32.totalorder %s34, 0
      %p318 = por %p316, %p317
      %p319 = scmp.ne.s32.totalorder %s311, %s313
      %p320 = scmp.eq.s32.totalorder %s39, 7
      %p321 = por %p319, %p320
      %p322 = scmp.ne.s32.totalorder %s313, %s314
      %p323 = scmp.eq.s32.totalorder %s39, 0
      %p324 = por %p322, %p323
      %p325 = scmp.ne.s32.totalorder %s313, %s314
      %p326 = scmp.eq.s32.totalorder %s40, 7
      %p327 = por %p325, %p326
      %p329 = scmp.ne.s32.totalorder %s314, %s328
      %p330 = scmp.eq.s32.totalorder %s40, 0
      %p331 = por %p329, %p330
      %s333 = sadd.s32 %s332, 1
      %p336 = scmp.eq.s32.totalorder %s34, 7
      %p337 = scmp.ne.s32.totalorder %s332, %s334
      %p338 = scmp.eq.s32.totalorder %s34, 0
      %p339 = por %p337, %p338
      %p340 = scmp.ne.s32.totalorder %s332, %s334
      %p341 = scmp.eq.s32.totalorder %s39, 7
      %p342 = por %p340, %p341
      %p343 = scmp.ne.s32.totalorder %s334, %s335
      %p344 = scmp.eq.s32.totalorder %s39, 0
      %p345 = por %p343, %p344
      %p346 = scmp.ne.s32.totalorder %s334, %s335
      %p347 = scmp.eq.s32.totalorder %s40, 7
      %p348 = por %p346, %p347
      %p350 = scmp.ne.s32.totalorder %s335, %s349
      %p351 = scmp.eq.s32.totalorder %s40, 0
      %p352 = por %p350, %p351
      %s354 = sadd.s32 %s353, 1
      %p357 = scmp.eq.s32.totalorder %s34, 7
      %p358 = scmp.ne.s32.totalorder %s353, %s355
      %p359 = scmp.eq.s32.totalorder %s34, 0
      %p360 = por %p358, %p359
      %p361 = scmp.ne.s32.totalorder %s353, %s355
      %p362 = scmp.eq.s32.totalorder %s39, 7
      %p363 = por %p361, %p362
      %p364 = scmp.ne.s32.totalorder %s355, %s356
      %p365 = scmp.eq.s32.totalorder %s39, 0
      %p366 = por %p364, %p365
      %p367 = scmp.ne.s32.totalorder %s355, %s356
      %p368 = scmp.eq.s32.totalorder %s40, 7
      %p369 = por %p367, %p368
      %p371 = scmp.ne.s32.totalorder %s356, %s370
      %p372 = scmp.eq.s32.totalorder %s40, 0
      %p373 = por %p371, %p372
      %s375 = sadd.s32 %s374, 1
      %p378 = scmp.eq.s32.totalorder %s34, 7
      %p379 = scmp.ne.s32.totalorder %s374, %s376
      %p380 = scmp.eq.s32.totalorder %s34, 0
      %p381 = por %p379, %p380
      %p382 = scmp.ne.s32.totalorder %s374, %s376
      %p383 = scmp.eq.s32.totalorder %s39, 7
      %p384 = por %p382, %p383
      %p385 = scmp.ne.s32.totalorder %s376, %s377
      %p386 = scmp.eq.s32.totalorder %s39, 0
      %p387 = por %p385, %p386
      %p388 = scmp.ne.s32.totalorder %s376, %s377
      %p389 = scmp.eq.s32.totalorder %s40, 7
      %p390 = por %p388, %p389
      %p392 = scmp.ne.s32.totalorder %s377, %s391
      %p393 = scmp.eq.s32.totalorder %s40, 0
      %p394 = por %p392, %p393
      %s396 = sadd.s32 %s395, 1
      %p399 = scmp.eq.s32.totalorder %s34, 7
      %p400 = scmp.ne.s32.totalorder %s395, %s397
      %p401 = scmp.eq.s32.totalorder %s34, 0
      %p402 = por %p400, %p401
      %p403 = scmp.ne.s32.totalorder %s395, %s397
      %p404 = scmp.eq.s32.totalorder %s39, 7
      %p405 = por %p403, %p404
      %p406 = scmp.ne.s32.totalorder %s397, %s398
      %p407 = scmp.eq.s32.totalorder %s39, 0
      %p408 = por %p406, %p407
      %p409 = scmp.ne.s32.totalorder %s397, %s398
      %p410 = scmp.eq.s32.totalorder %s40, 7
      %p411 = por %p409, %p410
      %p413 = scmp.ne.s32.totalorder %s398, %s412
      %p414 = scmp.eq.s32.totalorder %s40, 0
      %p415 = por %p413, %p414
      %s416 = ssub.s32 %s41, %s53
      %p417 = scmp.eq.s32.totalorder %s416, 0
      %s419 = sadd.s32 %s418, 1
      %s420 = scalar_select %p417, %s418, %s419
      %p423 = pneg %p417
      %p424 = scmp.eq.s32.totalorder %s34, 7
      %p425 = por %p423, %p424
      %p426 = scmp.ne.s32.totalorder %s418, %s421
      %p427 = scmp.eq.s32.totalorder %s34, 0
      %p428 = por %p426, %p427
      %p429 = scmp.ne.s32.totalorder %s418, %s421
      %p430 = scmp.eq.s32.totalorder %s39, 7
      %p431 = por %p429, %p430
      %p432 = scmp.ne.s32.totalorder %s421, %s422
      %p433 = scmp.eq.s32.totalorder %s39, 0
      %p434 = por %p432, %p433
      %p435 = scmp.ne.s32.totalorder %s421, %s422
      %p436 = scmp.eq.s32.totalorder %s40, 7
      %p437 = por %p435, %p436
      %p439 = scmp.ne.s32.totalorder %s422, %s438
      %p440 = scmp.eq.s32.totalorder %s40, 0
      %p441 = por %p439, %p440
      %s442 = ssub.s32 %s41, %s53
      %s443 = ssub.s32 %s42, %s49
      %s444 = sor.u32 %s442, %s443
      %p445 = scmp.eq.s32.totalorder %s444, 0
      %s447 = sadd.s32 %s446, 1
      %s448 = scalar_select %p445, %s446, %s447
      %p451 = pneg %p445
      %p452 = scmp.eq.s32.totalorder %s34, 7
      %p453 = por %p451, %p452
      %p454 = scmp.ne.s32.totalorder %s446, %s449
      %p455 = scmp.eq.s32.totalorder %s34, 0
      %p456 = por %p454, %p455
      %p457 = scmp.ne.s32.totalorder %s446, %s449
      %p458 = scmp.eq.s32.totalorder %s39, 7
      %p459 = por %p457, %p458
      %p460 = scmp.ne.s32.totalorder %s449, %s450
      %p461 = scmp.eq.s32.totalorder %s39, 0
      %p462 = por %p460, %p461
      %p463 = scmp.ne.s32.totalorder %s449, %s450
      %p464 = scmp.eq.s32.totalorder %s40, 7
      %p465 = por %p463, %p464
      %p467 = scmp.ne.s32.totalorder %s450, %s466
      %p468 = scmp.eq.s32.totalorder %s40, 0
      %p469 = por %p467, %p468
      %p470 = scmp.le.s32.totalorder 1, %s34
      %p471 = scmp.lt.s32.totalorder %s34, 9
      %p472 = pnand %p470, %p471
      %p473 = pneg %p472
      // Predicated region
      $region9: #{tpu_custom_call.1} parent=5 // pred_check
        _
      $region10: #{tpu_custom_call.1} parent=5 // pred_check_branch
        %475 = sbr.rel (%p472) target = $region12
      $region11: #{tpu_custom_call.1} parent=5 // pred_region
        %s476 = ssub.s32 %s34, 1
        // Predicated region
        $region13: #{tpu_custom_call.1} parent=11 // pred_check
          %p477 = pneg %p93
        $region14: #{tpu_custom_call.1} parent=11 // pred_check_branch
          %479 = sbr.rel (%p477) target = $region16
        $region15: #{tpu_custom_call.1} parent=11 // pred_region
          _
        $region16: #{tpu_custom_call.1} parent=11 // pred_fallthru
          _
        // Predicated region
        $region17: #{tpu_custom_call.1} parent=11 // pred_check
          %p480 = pneg %p114
        $region18: #{tpu_custom_call.1} parent=11 // pred_check_branch
          %482 = sbr.rel (%p480) target = $region20
        $region19: #{tpu_custom_call.1} parent=11 // pred_region
          _
        $region20: #{tpu_custom_call.1} parent=11 // pred_fallthru
          _
        // Predicated region
        $region21: #{tpu_custom_call.1} parent=11 // pred_check
          %p483 = pneg %p135
        $region22: #{tpu_custom_call.1} parent=11 // pred_check_branch
          %485 = sbr.rel (%p483) target = $region24
        $region23: #{tpu_custom_call.1} parent=11 // pred_region
          _
        $region24: #{tpu_custom_call.1} parent=11 // pred_fallthru
          _
        // Predicated region
        $region25: #{tpu_custom_call.1} parent=11 // pred_check
          %p486 = pneg %p156
        $region26: #{tpu_custom_call.1} parent=11 // pred_check_branch
          %488 = sbr.rel (%p486) target = $region28
        $region27: #{tpu_custom_call.1} parent=11 // pred_region
          _
        $region28: #{tpu_custom_call.1} parent=11 // pred_fallthru
          _
        // Predicated region
        $region29: #{tpu_custom_call.1} parent=11 // pred_check
          %p489 = pneg %p177
        $region30: #{tpu_custom_call.1} parent=11 // pred_check_branch
          %491 = sbr.rel (%p489) target = $region32
        $region31: #{tpu_custom_call.1} parent=11 // pred_region
          _
        $region32: #{tpu_custom_call.1} parent=11 // pred_fallthru
          _
        // Predicated region
        $region33: #{tpu_custom_call.1} parent=11 // pred_check
          %p492 = pneg %p198
        $region34: #{tpu_custom_call.1} parent=11 // pred_check_branch
          %494 = sbr.rel (%p492) target = $region36
        $region35: #{tpu_custom_call.1} parent=11 // pred_region
          _
        $region36: #{tpu_custom_call.1} parent=11 // pred_fallthru
          _
        // Predicated region
        $region37: #{tpu_custom_call.1} parent=11 // pred_check
          %p495 = pneg %p219
        $region38: #{tpu_custom_call.1} parent=11 // pred_check_branch
          %497 = sbr.rel (%p495) target = $region40
        $region39: #{tpu_custom_call.1} parent=11 // pred_region
          _
        $region40: #{tpu_custom_call.1} parent=11 // pred_fallthru
          _
        // Predicated region
        $region41: #{tpu_custom_call.1} parent=11 // pred_check
          %p498 = pneg %p240
        $region42: #{tpu_custom_call.1} parent=11 // pred_check_branch
          %500 = sbr.rel (%p498) target = $region44
        $region43: #{tpu_custom_call.1} parent=11 // pred_region
          _
        $region44: #{tpu_custom_call.1} parent=11 // pred_fallthru
          _
        // Predicated region
        $region45: #{tpu_custom_call.1} parent=11 // pred_check
          %p501 = pneg %p261
        $region46: #{tpu_custom_call.1} parent=11 // pred_check_branch
          %503 = sbr.rel (%p501) target = $region48
        $region47: #{tpu_custom_call.1} parent=11 // pred_region
          _
        $region48: #{tpu_custom_call.1} parent=11 // pred_fallthru
          _
        // Predicated region
        $region49: #{tpu_custom_call.1} parent=11 // pred_check
          %p504 = pneg %p282
        $region50: #{tpu_custom_call.1} parent=11 // pred_check_branch
          %506 = sbr.rel (%p504) target = $region52
        $region51: #{tpu_custom_call.1} parent=11 // pred_region
          _
        $region52: #{tpu_custom_call.1} parent=11 // pred_fallthru
          _
        // Predicated region
        $region53: #{tpu_custom_call.1} parent=11 // pred_check
          %p507 = pneg %p303
        $region54: #{tpu_custom_call.1} parent=11 // pred_check_branch
          %509 = sbr.rel (%p507) target = $region56
        $region55: #{tpu_custom_call.1} parent=11 // pred_region
          _
        $region56: #{tpu_custom_call.1} parent=11 // pred_fallthru
          _
        // Predicated region
        $region57: #{tpu_custom_call.1} parent=11 // pred_check
          %p510 = pneg %p324
        $region58: #{tpu_custom_call.1} parent=11 // pred_check_branch
          %512 = sbr.rel (%p510) target = $region60
        $region59: #{tpu_custom_call.1} parent=11 // pred_region
          _
        $region60: #{tpu_custom_call.1} parent=11 // pred_fallthru
          _
        // Predicated region
        $region61: #{tpu_custom_call.1} parent=11 // pred_check
          %p513 = pneg %p345
        $region62: #{tpu_custom_call.1} parent=11 // pred_check_branch
          %515 = sbr.rel (%p513) target = $region64
        $region63: #{tpu_custom_call.1} parent=11 // pred_region
          _
        $region64: #{tpu_custom_call.1} parent=11 // pred_fallthru
          _
        // Predicated region
        $region65: #{tpu_custom_call.1} parent=11 // pred_check
          %p516 = pneg %p366
        $region66: #{tpu_custom_call.1} parent=11 // pred_check_branch
          %518 = sbr.rel (%p516) target = $region68
        $region67: #{tpu_custom_call.1} parent=11 // pred_region
          _
        $region68: #{tpu_custom_call.1} parent=11 // pred_fallthru
          _
        // Predicated region
        $region69: #{tpu_custom_call.1} parent=11 // pred_check
          %p519 = pneg %p387
        $region70: #{tpu_custom_call.1} parent=11 // pred_check_branch
          %521 = sbr.rel (%p519) target = $region72
        $region71: #{tpu_custom_call.1} parent=11 // pred_region
          _
        $region72: #{tpu_custom_call.1} parent=11 // pred_fallthru
          _
        // Predicated region
        $region73: #{tpu_custom_call.1} parent=11 // pred_check
          %p522 = pneg %p408
        $region74: #{tpu_custom_call.1} parent=11 // pred_check_branch
          %524 = sbr.rel (%p522) target = $region76
        $region75: #{tpu_custom_call.1} parent=11 // pred_region
          _
        $region76: #{tpu_custom_call.1} parent=11 // pred_fallthru
          _
      $region12: #{tpu_custom_call.1} parent=5 // pred_fallthru
        _
      %p525 = scmp.lt.s32.totalorder %s34, 8
      // Predicated region
      $region77: #{tpu_custom_call.1} parent=5 // pred_check
        %p526 = pneg %p525
      $region78: #{tpu_custom_call.1} parent=5 // pred_check_branch
        %528 = sbr.rel (%p526) target = $region80
      $region79: #{tpu_custom_call.1} parent=5 // pred_region
        // Predicated region
        $region81: #{tpu_custom_call.1} parent=79 // pred_check
          %p529 = pneg %p66
        $region82: #{tpu_custom_call.1} parent=79 // pred_check_branch
          %531 = sbr.rel (%p529) target = $region84
        $region83: #{tpu_custom_call.1} parent=79 // pred_region
          %s532 = sand.u32 %s56, 1
          %s533 = scalar_lea.sflag [#allocation7], %s532
          %s534 = sand.u32 %s56, 1
          %s535 = smul.addr %s534, 8
          %s536 = scalar_lea.vmem [#allocation6], %s535
          %s538 = ssub.s32 128, 128
          %539 = vsyncadd %s533, %s538
          %s540 = smul.addr %s41, 128
          %s541 = scalar_lea.hbm %s0, %s540
          %s543 = sshll.u32 %s536, 4
          %s544 = int_to_ptr.vmem [resolvable:$true] %s543
          %546 = dma.hbm_to_vmem [thread:$0]  %s541, 128, %s544, %s533
        $region84: #{tpu_custom_call.1} parent=79 // pred_fallthru
          _
      $region80: #{tpu_custom_call.1} parent=5 // pred_fallthru
        _
      %p547 = scmp.le.s32.totalorder 1, %s34
      %p548 = scmp.lt.s32.totalorder %s34, 9
      %p549 = pnand %p547, %p548
      %p550 = pneg %p549
      // Predicated region
      $region85: #{tpu_custom_call.1} parent=5 // pred_check
        _
      $region86: #{tpu_custom_call.1} parent=5 // pred_check_branch
        %552 = sbr.rel (%p549) target = $region88
      $region87: #{tpu_custom_call.1} parent=5 // pred_region
        %s553 = ssub.s32 %s34, 1
        %s554 = sand.u32 %s59, 1
        %s555 = scalar_lea.sflag [#allocation7], %s554
        %s556 = sand.u32 %s59, 1
        %s557 = smul.addr %s556, 8
        %s558 = scalar_lea.vmem [#allocation6], %s557
        // Predicated region
        $region89: #{tpu_custom_call.1} parent=87 // pred_check
          %p559 = pneg %p72
        $region90: #{tpu_custom_call.1} parent=87 // pred_check_branch
          %561 = sbr.rel (%p559) target = $region92
        $region91: #{tpu_custom_call.1} parent=87 // pred_region
          %562 = dma.done %s555, 128
        $region92: #{tpu_custom_call.1} parent=87 // pred_fallthru
          _
        %s563 = sand.u32 %s59, 1
        %s564 = scalar_lea.sflag [#allocation7], %s563
        %s565 = sand.u32 %s59, 1
        %s566 = smul.addr %s565, 8
        %s567 = scalar_lea.vmem [#allocation6], %s566
        %p568 = pneg %p72
        %p569 = pneg %p69
        %p570 = pneg %p93
        %p571 = pneg %p90
        %p572 = pneg %p114
        %p573 = pneg %p111
        %p574 = pneg %p135
        %p575 = pneg %p132
        %p576 = pneg %p156
        %p577 = pneg %p153
        %p578 = pneg %p177
        %p579 = pneg %p174
        %p580 = pneg %p198
        %p581 = pneg %p195
        %p582 = pneg %p219
        %p583 = pneg %p216
        %p584 = pneg %p240
        %p585 = pneg %p237
        %p586 = pneg %p261
        %p587 = pneg %p258
        %p588 = pneg %p282
        %p589 = pneg %p279
        %p590 = pneg %p303
        %p591 = pneg %p300
        %p592 = pneg %p324
        %p593 = pneg %p321
        %p594 = pneg %p345
        %p595 = pneg %p342
        %p596 = pneg %p366
        %p597 = pneg %p363
        %p598 = pneg %p387
        %p599 = pneg %p384
        %p600 = pneg %p408
        %p601 = pneg %p405
        %p602 = pneg %p434
        %p603 = pneg %p431
        %s604 = sand.u32 %s421, 1
        %s605 = scalar_lea.sflag [#allocation8], %s604
        %s606 = sand.u32 %s421, 1
        %s607 = smul.addr %s606, 8
        %s608 = scalar_lea.vmem [#allocation9], %s607
        %p609 = pneg %p462
        %p610 = pneg %p459
        %s611 = sand.u32 %s449, 1
        %s612 = scalar_lea.sflag [#allocation11], %s611
        %s613 = sand.u32 %s449, 1
        %s614 = smul.addr %s613, 8
        %s615 = scalar_lea.vmem [#allocation10], %s614
        %p617 = scmp.eq.s32.totalorder %s44, 0
        // Predicated region
        $region93: #{tpu_custom_call.1} parent=87 // pred_check
          %p618 = pneg %p617
        $region94: #{tpu_custom_call.1} parent=87 // pred_check_branch
          %620 = sbr.rel (%p618) target = $region96
        $region95: #{tpu_custom_call.1} parent=87 // pred_region
          %v621 = vld [vmem:[%s558] sm:$0xff]
          %v622 = vld [vmem:[%s1] sm:$0x1]
          %v623 = vld [vmem:[%s2] sm:$0x1]
          %vm624 = vcmask 261120
          %v625 = vsel %vm624, %v621, 0.0
          %626 = vadd.xlane.f32.xlu0 %v625
          %v627 = vpop.xlane.xlu0 %626
          %v628 = vrcp.pop 32.0
          %v629 = vmul.f32 %v627, %v628
          %v630 = vsub.f32 %v621, %v629
          %v631 = vmul.f32 %v630, %v630
          %v632 = vsel %vm624, %v631, 0.0
          %633 = vadd.xlane.f32.xlu0 %v632
          %v634 = vpop.xlane.xlu0 %633
          %v635 = vmul.f32 %v634, %v628
          %v636 = vadd.f32 %v635, 1e-05
          %v637 = vrsqrt.pop %v636
          %v638 = vmul.f32 %v630, %v637
          %v640 = vlaneseq
          %v641 = vshrl.u32 %v640, 7
          %v642 = vsub.s32 0, %v641
          %v643 = vrot.slane %v622, %v642
          %v645 = vmul.f32 %v638, %v643
          %v647 = vlaneseq
          %v648 = vshrl.u32 %v647, 7
          %v649 = vsub.s32 0, %v648
          %v650 = vrot.slane %v623, %v649
          %v652 = vadd.f32 %v645, %v650
          %v653 = vpack.c.bf16 %v652, %v652
          %v654 = vld [vmem:[%s5] sm:$0xff]
          %v655 = vld [vmem:[%s5 + $0x8] sm:$0xff]
          %v656 = vld [vmem:[%s5 + $0x10] sm:$0xff]
          %v657 = vld [vmem:[%s5 + $0x18] sm:$0xff]
          %v658 = vpack.c.bf16 %v655, %v654
          %v659 = vpack.c.bf16 %v657, %v656
          %v660 = vld [vmem:[%s6] sm:$0x1]
          %v662 = vlaneseq
          %v663 = vshrl.u32 %v662, 7
          %v664 = vsub.s32 0, %v663
          %v665 = vrot.slane %v660, %v664
          %v668 = vsel %vm624, %v653, 0
          %670 = vmatprep.subr.bf16.mxu0 0
          %671 = vmatpush1.bf16.msra.mxu0 %v658
          %672 = vmatprep.subr.bf16.mxu0 0
          %673 = vmatpush1.bf16.msra.mxu0 %v659
          %674 = vmatprep.subr.bf16.mxu0 0
          %675 = vmatpush1.bf16.msra.mxu0 0
          %676 = vmatprep.subr.bf16.mxu0 0
          %677 = vmatpush1.bf16.msra.mxu0 0
          %678 = vmatprep.subr.bf16.mxu0 0
          %679 = vmatpush1.bf16.msra.mxu0 0
          %680 = vmatprep.subr.bf16.mxu0 0
          %681 = vmatpush1.bf16.msra.mxu0 0
          %682 = vmatprep.subr.bf16.mxu0 0
          %683 = vmatpush1.bf16.msra.mxu0 0
          %684 = vmatprep.subr.bf16.mxu0 0
          %685 = vmatpush1.bf16.msra.mxu0 0
          %686 = vmatprep.subr.bf16.mxu0 0
          %687 = vmatpush1.bf16.msra.mxu0 0
          %688 = vmatprep.subr.bf16.mxu0 0
          %689 = vmatpush1.bf16.msra.mxu0 0
          %690 = vmatprep.subr.bf16.mxu0 0
          %691 = vmatpush1.bf16.msra.mxu0 0
          %692 = vmatprep.subr.bf16.mxu0 0
          %693 = vmatpush1.bf16.msra.mxu0 0
          %694 = vmatprep.subr.bf16.mxu0 0
          %695 = vmatpush1.bf16.msra.mxu0 0
          %696 = vmatprep.subr.bf16.mxu0 0
          %697 = vmatpush1.bf16.msra.mxu0 0
          %698 = vmatprep.subr.bf16.mxu0 0
          %699 = vmatpush1.bf16.msra.mxu0 0
          %700 = vmatprep.subr.bf16.mxu0 0
          %701 = vmatpush1.bf16.msra.mxu0 0
          %702 = vmatprep.mubr.bf16.mxu0 0
          %703 = vmatmul.mubr.bf16.gmra.mrb[0].mxu0 %v668
          %v704 = vpop.f32.mrb[0].mxu0
          %v705 = vadd.f32 %v665, %v704
          %v706 = vpop.f32.mrb[0].mxu0
          %v707 = vpop.f32.mrb[0].mxu0
          %v708 = vpop.f32.mrb[0].mxu0
          %709 = vdwg.mxu0
          %v710 = vld [vmem:[%s7] sm:$0xff]
          %v711 = vld [vmem:[%s7 + $0x8] sm:$0xff]
          %v712 = vld [vmem:[%s7 + $0x10] sm:$0xff]
          %v713 = vld [vmem:[%s7 + $0x18] sm:$0xff]
          %v714 = vpack.c.bf16 %v711, %v710
          %v715 = vpack.c.bf16 %v713, %v712
          %v716 = vld [vmem:[%s8] sm:$0x1]
          %v718 = vlaneseq
          %v719 = vshrl.u32 %v718, 7
          %v720 = vsub.s32 0, %v719
          %v721 = vrot.slane %v716, %v720
          %723 = vmatprep.subr.bf16.mxu0 0
          %724 = vmatpush1.bf16.msra.mxu0 %v714
          %725 = vmatprep.subr.bf16.mxu0 0
          %726 = vmatpush1.bf16.msra.mxu0 %v715
          %727 = vmatprep.subr.bf16.mxu0 0
          %728 = vmatpush1.bf16.msra.mxu0 0
          %729 = vmatprep.subr.bf16.mxu0 0
          %730 = vmatpush1.bf16.msra.mxu0 0
          %731 = vmatprep.subr.bf16.mxu0 0
          %732 = vmatpush1.bf16.msra.mxu0 0
          %733 = vmatprep.subr.bf16.mxu0 0
          %734 = vmatpush1.bf16.msra.mxu0 0
          %735 = vmatprep.subr.bf16.mxu0 0
          %736 = vmatpush1.bf16.msra.mxu0 0
          %737 = vmatprep.subr.bf16.mxu0 0
          %738 = vmatpush1.bf16.msra.mxu0 0
          %739 = vmatprep.subr.bf16.mxu0 0
          %740 = vmatpush1.bf16.msra.mxu0 0
          %741 = vmatprep.subr.bf16.mxu0 0
          %742 = vmatpush1.bf16.msra.mxu0 0
          %743 = vmatprep.subr.bf16.mxu0 0
          %744 = vmatpush1.bf16.msra.mxu0 0
          %745 = vmatprep.subr.bf16.mxu0 0
          %746 = vmatpush1.bf16.msra.mxu0 0
          %747 = vmatprep.subr.bf16.mxu0 0
          %748 = vmatpush1.bf16.msra.mxu0 0
          %749 = vmatprep.subr.bf16.mxu0 0
          %750 = vmatpush1.bf16.msra.mxu0 0
          %751 = vmatprep.subr.bf16.mxu0 0
          %752 = vmatpush1.bf16.msra.mxu0 0
          %753 = vmatprep.subr.bf16.mxu0 0
          %754 = vmatpush1.bf16.msra.mxu0 0
          %755 = vmatprep.mubr.bf16.mxu0 0
          %756 = vmatmul.mubr.bf16.gmra.mrb[0].mxu0 %v668
          %v757 = vpop.f32.mrb[0].mxu0
          %v758 = vadd.f32 %v721, %v757
          %v759 = vpop.f32.mrb[0].mxu0
          %v760 = vpop.f32.mrb[0].mxu0
          %v761 = vpop.f32.mrb[0].mxu0
          %762 = vdwg.mxu0
          %v763 = vld [vmem:[%s9] sm:$0xff]
          %v764 = vld [vmem:[%s9 + $0x8] sm:$0xff]
          %v765 = vld [vmem:[%s9 + $0x10] sm:$0xff]
          %v766 = vld [vmem:[%s9 + $0x18] sm:$0xff]
          %v767 = vpack.c.bf16 %v764, %v763
          %v768 = vpack.c.bf16 %v766, %v765
          %v769 = vld [vmem:[%s10] sm:$0x1]
          %v771 = vlaneseq
          %v772 = vshrl.u32 %v771, 7
          %v773 = vsub.s32 0, %v772
          %v774 = vrot.slane %v769, %v773
          %776 = vmatprep.subr.bf16.mxu0 0
          %777 = vmatpush1.bf16.msra.mxu0 %v767
          %778 = vmatprep.subr.bf16.mxu0 0
          %779 = vmatpush1.bf16.msra.mxu0 %v768
          %780 = vmatprep.subr.bf16.mxu0 0
          %781 = vmatpush1.bf16.msra.mxu0 0
          %782 = vmatprep.subr.bf16.mxu0 0
          %783 = vmatpush1.bf16.msra.mxu0 0
          %784 = vmatprep.subr.bf16.mxu0 0
          %785 = vmatpush1.bf16.msra.mxu0 0
          %786 = vmatprep.subr.bf16.mxu0 0
          %787 = vmatpush1.bf16.msra.mxu0 0
          %788 = vmatprep.subr.bf16.mxu0 0
          %789 = vmatpush1.bf16.msra.mxu0 0
          %790 = vmatprep.subr.bf16.mxu0 0
          %791 = vmatpush1.bf16.msra.mxu0 0
          %792 = vmatprep.subr.bf16.mxu0 0
          %793 = vmatpush1.bf16.msra.mxu0 0
          %794 = vmatprep.subr.bf16.mxu0 0
          %795 = vmatpush1.bf16.msra.mxu0 0
          %796 = vmatprep.subr.bf16.mxu0 0
          %797 = vmatpush1.bf16.msra.mxu0 0
          %798 = vmatprep.subr.bf16.mxu0 0
          %799 = vmatpush1.bf16.msra.mxu0 0
          %800 = vmatprep.subr.bf16.mxu0 0
          %801 = vmatpush1.bf16.msra.mxu0 0
          %802 = vmatprep.subr.bf16.mxu0 0
          %803 = vmatpush1.bf16.msra.mxu0 0
          %804 = vmatprep.subr.bf16.mxu0 0
          %805 = vmatpush1.bf16.msra.mxu0 0
          %806 = vmatprep.subr.bf16.mxu0 0
          %807 = vmatpush1.bf16.msra.mxu0 0
          %808 = vmatprep.mubr.bf16.mxu0 0
          %809 = vmatmul.mubr.bf16.gmra.mrb[0].mxu0 %v668
          %v810 = vpop.f32.mrb[0].mxu0
          %v811 = vadd.f32 %v774, %v810
          %v812 = vpop.f32.mrb[0].mxu0
          %v813 = vpop.f32.mrb[0].mxu0
          %v814 = vpop.f32.mrb[0].mxu0
          %815 = vdwg.mxu0
          %vm816 = vcmask 64512
          %817 = vst.msk [vmem:[#allocation2] sm:$0xff] %vm816, %v705
          %818 = vst.msk [vmem:[#allocation3] sm:$0xff] %vm816, %v758
          %819 = vst.msk [vmem:[#allocation4] sm:$0xff] %vm816, %v811
          %821 = vrot.lane.b32.xlu0 %v705, 120
          %v822 = vpop.permute.xlu0 %821
          %s824 = scalar_lea.vmem [#allocation2], 8
          %825 = vst.msk [vmem:[%s824] sm:$0xff] %vm816, %v822
          %827 = vrot.lane.b32.xlu0 %v758, 120
          %v828 = vpop.permute.xlu0 %827
          %s830 = scalar_lea.vmem [#allocation3], 8
          %831 = vst.msk [vmem:[%s830] sm:$0xff] %vm816, %v828
          %833 = vrot.lane.b32.xlu0 %v811, 120
          %v834 = vpop.permute.xlu0 %833
          %s836 = scalar_lea.vmem [#allocation4], 8
          %837 = vst.msk [vmem:[%s836] sm:$0xff] %vm816, %v834
          %838 = vrot.lane.b32.xlu0 %v705, 112
          %v839 = vpop.permute.xlu0 %838
          %s841 = scalar_lea.vmem [#allocation2], 16
          %842 = vst.msk [vmem:[%s841] sm:$0xff] %vm816, %v839
          %843 = vrot.lane.b32.xlu0 %v758, 112
          %v844 = vpop.permute.xlu0 %843
          %s846 = scalar_lea.vmem [#allocation3], 16
          %847 = vst.msk [vmem:[%s846] sm:$0xff] %vm816, %v844
          %848 = vrot.lane.b32.xlu0 %v811, 112
          %v849 = vpop.permute.xlu0 %848
          %s851 = scalar_lea.vmem [#allocation4], 16
          %852 = vst.msk [vmem:[%s851] sm:$0xff] %vm816, %v849
          %853 = vrot.lane.b32.xlu0 %v705, 104
          %v854 = vpop.permute.xlu0 %853
          %s856 = scalar_lea.vmem [#allocation2], 24
          %857 = vst.msk [vmem:[%s856] sm:$0xff] %vm816, %v854
          %858 = vrot.lane.b32.xlu0 %v758, 104
          %v859 = vpop.permute.xlu0 %858
          %s861 = scalar_lea.vmem [#allocation3], 24
          %862 = vst.msk [vmem:[%s861] sm:$0xff] %vm816, %v859
          %863 = vrot.lane.b32.xlu0 %v811, 104
          %v864 = vpop.permute.xlu0 %863
          %s866 = scalar_lea.vmem [#allocation4], 24
          %867 = vst.msk [vmem:[%s866] sm:$0xff] %vm816, %v864
          %868 = vst.msk [vmem:[#allocation5] sm:$0xff] %vm624, 0.0
        $region96: #{tpu_custom_call.1} parent=87 // pred_fallthru
          _
        %s869 = smul.u32 %s44, 8
        %s870 = scalar_lea.vmem [#allocation2], %s869
        %v871 = vld [vmem:[%s870] sm:$0xff]
        %v872 = vmul.f32 %v871, 0.35355338
        %v873 = vpack.c.bf16 %v872, %v872
        %s874 = scalar_lea.vmem [#allocation3], %s869
        %v875 = vld [vmem:[%s874] sm:$0xff]
        %v876 = vpack.c.bf16 %v875, %v875
        %s877 = scalar_lea.vmem [#allocation4], %s869
        %v878 = vld [vmem:[%s877] sm:$0xff]
        %v879 = vpack.c.bf16 %v878, %v878
        %v880 = vlaneseq
        %v881 = vshrl.u32 %v880, 7
        %v882 = vlaneseq
        %v883 = vand.u32 %v882, 127
        %v884 = vsub.s32 %v883, %v881
        %v885 = vcvt.s32.f32 %v884
        %s886 = sadd.s32 %s44, 1
        %s887 = scvt.s32.f32 %s886
        %s888 = smul.f32 %s887, -2.0
        %v889 = vstv %s888
        %v890 = vmul.f32 %v889, 0.6931472
        %v891 = vmul.f32 %v890, 1.442695
        %v892 = vpow.pop %v891
        %vm893 = vcmp.le.s32.totalorder %v883, %v881
        %v894 = vmul.f32 %v892, %v885
        %v895 = vsel %vm893, %v894, -1e+09
        %vm896 = vcmask 64512
        %v898 = vsel %vm896, %v873, 0
        %v901 = vsel %vm896, %v876, 0
        %903 = vmatprep.subr.bf16.mxu0 0
        %904 = vmatpush1.bf16.xpose.msra.mxu0 %v901
        %905 = vmatprep.subr.bf16.mxu0 0
        %906 = vmatpush1.bf16.xpose.msra.mxu0 0
        %907 = vmatprep.subr.bf16.mxu0 0
        %908 = vmatpush1.bf16.xpose.msra.mxu0 0
        %909 = vmatprep.subr.bf16.mxu0 0
        %910 = vmatpush1.bf16.xpose.msra.mxu0 0
        %911 = vmatprep.subr.bf16.mxu0 0
        %912 = vmatpush1.bf16.xpose.msra.mxu0 0
        %913 = vmatprep.subr.bf16.mxu0 0
        %914 = vmatpush1.bf16.xpose.msra.mxu0 0
        %915 = vmatprep.subr.bf16.mxu0 0
        %916 = vmatpush1.bf16.xpose.msra.mxu0 0
        %917 = vmatprep.subr.bf16.mxu0 0
        %918 = vmatpush1.bf16.xpose.msra.mxu0 0
        %919 = vmatprep.subr.bf16.mxu0 0
        %920 = vmatpush1.bf16.xpose.msra.mxu0 0
        %921 = vmatprep.subr.bf16.mxu0 0
        %922 = vmatpush1.bf16.xpose.msra.mxu0 0
        %923 = vmatprep.subr.bf16.mxu0 0
        %924 = vmatpush1.bf16.xpose.msra.mxu0 0
        %925 = vmatprep.subr.bf16.mxu0 0
        %926 = vmatpush1.bf16.xpose.msra.mxu0 0
        %927 = vmatprep.subr.bf16.mxu0 0
        %928 = vmatpush1.bf16.xpose.msra.mxu0 0
        %929 = vmatprep.subr.bf16.mxu0 0
        %930 = vmatpush1.bf16.xpose.msra.mxu0 0
        %931 = vmatprep.subr.bf16.mxu0 0
        %932 = vmatpush1.bf16.xpose.msra.mxu0 0
        %933 = vmatprep.subr.bf16.mxu0 0
        %934 = vmatpush1.bf16.xpose.msra.mxu0 0
        %935 = vmatprep.mubr.bf16.mxu0 0
        %936 = vmatmul.mubr.bf16.gmra.mrb[0].mxu0 %v898
        %v937 = vpop.f32.mrb[0].mxu0
        %v938 = vadd.f32 %v895, %v937
        %v939 = vpop.f32.mrb[0].mxu0
        %v940 = vpop.f32.mrb[0].mxu0
        %v941 = vpop.f32.mrb[0].mxu0
        %942 = vdwg.mxu0
        %v943 = vsel %vm896, %v938, -inf
        %944 = vmax.xlane.f32.xlu0 %v943
        %v945 = vpop.xlane.xlu0 %944
        %v946 = vsub.f32 %v938, %v945
        %v947 = vmul.f32 %v946, 1.442695
        %v948 = vpow.pop %v947
        %v949 = vsel %vm896, %v948, 0.0
        %950 = vadd.xlane.f32.xlu0 %v949
        %v951 = vpop.xlane.xlu0 %950
        %v952 = vrcp.pop %v951
        %v953 = vmul.f32 %v948, %v952
        %954 = vst.msk [vmem:[%s615] sm:$0xff] %vm896, %v953
        %v955 = vpack.c.bf16 %v953, %v953
        %v957 = vsel %vm896, %v955, 0
        %vm959 = vcmask 1043456
        %v961 = vsel %vm959, %v879, 0
        %963 = vmatprep.subr.bf16.mxu0 0
        %964 = vmatpush1.bf16.msra.mxu0 %v961
        %965 = vmatprep.subr.bf16.mxu0 0
        %966 = vmatpush1.bf16.msra.mxu0 0
        %967 = vmatprep.subr.bf16.mxu0 0
        %968 = vmatpush1.bf16.msra.mxu0 0
        %969 = vmatprep.subr.bf16.mxu0 0
        %970 = vmatpush1.bf16.msra.mxu0 0
        %971 = vmatprep.subr.bf16.mxu0 0
        %972 = vmatpush1.bf16.msra.mxu0 0
        %973 = vmatprep.subr.bf16.mxu0 0
        %974 = vmatpush1.bf16.msra.mxu0 0
        %975 = vmatprep.subr.bf16.mxu0 0
        %976 = vmatpush1.bf16.msra.mxu0 0
        %977 = vmatprep.subr.bf16.mxu0 0
        %978 = vmatpush1.bf16.msra.mxu0 0
        %979 = vmatprep.subr.bf16.mxu0 0
        %980 = vmatpush1.bf16.msra.mxu0 0
        %981 = vmatprep.subr.bf16.mxu0 0
        %982 = vmatpush1.bf16.msra.mxu0 0
        %983 = vmatprep.subr.bf16.mxu0 0
        %984 = vmatpush1.bf16.msra.mxu0 0
        %985 = vmatprep.subr.bf16.mxu0 0
        %986 = vmatpush1.bf16.msra.mxu0 0
        %987 = vmatprep.subr.bf16.mxu0 0
        %988 = vmatpush1.bf16.msra.mxu0 0
        %989 = vmatprep.subr.bf16.mxu0 0
        %990 = vmatpush1.bf16.msra.mxu0 0
        %991 = vmatprep.subr.bf16.mxu0 0
        %992 = vmatpush1.bf16.msra.mxu0 0
        %993 = vmatprep.subr.bf16.mxu0 0
        %994 = vmatpush1.bf16.msra.mxu0 0
        %995 = vmatprep.mubr.bf16.mxu0 0
        %996 = vmatmul.mubr.bf16.gmra.mrb[0].mxu0 %v957
        %v997 = vpop.f32.mrb[0].mxu0
        %v998 = vadd.f32 0.0, %v997
        %v999 = vpop.f32.mrb[0].mxu0
        %v1000 = vpop.f32.mrb[0].mxu0
        %v1001 = vpop.f32.mrb[0].mxu0
        %1002 = vdwg.mxu0
        %s1003 = scalar_lea.vmem %s11, %s869
        %v1004 = vld [vmem:[%s1003] sm:$0xff]
        %v1005 = vpack.c.bf16 %v1004, %v1004
        %v1006 = vld [vmem:[#allocation5] sm:$0xff]
        %v1007 = vpack.c.bf16 %v998, %v998
        %v1009 = vsel %vm896, %v1007, 0
        %v1012 = vsel %vm959, %v1005, 0
        %1014 = vmatprep.subr.bf16.mxu0 0
        %1015 = vmatpush1.bf16.msra.mxu0 %v1012
        %1016 = vmatprep.subr.bf16.mxu0 0
        %1017 = vmatpush1.bf16.msra.mxu0 0
        %1018 = vmatprep.subr.bf16.mxu0 0
        %1019 = vmatpush1.bf16.msra.mxu0 0
        %1020 = vmatprep.subr.bf16.mxu0 0
        %1021 = vmatpush1.bf16.msra.mxu0 0
        %1022 = vmatprep.subr.bf16.mxu0 0
        %1023 = vmatpush1.bf16.msra.mxu0 0
        %1024 = vmatprep.subr.bf16.mxu0 0
        %1025 = vmatpush1.bf16.msra.mxu0 0
        %1026 = vmatprep.subr.bf16.mxu0 0
        %1027 = vmatpush1.bf16.msra.mxu0 0
        %1028 = vmatprep.subr.bf16.mxu0 0
        %1029 = vmatpush1.bf16.msra.mxu0 0
        %1030 = vmatprep.subr.bf16.mxu0 0
        %1031 = vmatpush1.bf16.msra.mxu0 0
        %1032 = vmatprep.subr.bf16.mxu0 0
        %1033 = vmatpush1.bf16.msra.mxu0 0
        %1034 = vmatprep.subr.bf16.mxu0 0
        %1035 = vmatpush1.bf16.msra.mxu0 0
        %1036 = vmatprep.subr.bf16.mxu0 0
        %1037 = vmatpush1.bf16.msra.mxu0 0
        %1038 = vmatprep.subr.bf16.mxu0 0
        %1039 = vmatpush1.bf16.msra.mxu0 0
        %1040 = vmatprep.subr.bf16.mxu0 0
        %1041 = vmatpush1.bf16.msra.mxu0 0
        %1042 = vmatprep.subr.bf16.mxu0 0
        %1043 = vmatpush1.bf16.msra.mxu0 0
        %1044 = vmatprep.subr.bf16.mxu0 0
        %1045 = vmatpush1.bf16.msra.mxu0 0
        %1046 = vmatprep.mubr.bf16.mxu0 0
        %1047 = vmatmul.mubr.bf16.gmra.mrb[0].mxu0 %v1009
        %v1048 = vpop.f32.mrb[0].mxu0
        %v1049 = vadd.f32 0.0, %v1048
        %v1050 = vpop.f32.mrb[0].mxu0
        %v1051 = vpop.f32.mrb[0].mxu0
        %v1052 = vpop.f32.mrb[0].mxu0
        %1053 = vdwg.mxu0
        %v1054 = vadd.f32 %v1006, %v1049
        %vm1055 = vcmask 261120
        %1056 = vst.msk [vmem:[#allocation5] sm:$0xff] %vm1055, %v1054
        %p1057 = scmp.eq.s32.totalorder %s44, 3
        // Predicated region
        $region97: #{tpu_custom_call.1} parent=87 // pred_check
          %p1058 = pneg %p1057
        $region98: #{tpu_custom_call.1} parent=87 // pred_check_branch
          %1060 = sbr.rel (%p1058) target = $region100
        $region99: #{tpu_custom_call.1} parent=87 // pred_region
          %v1061 = vld [vmem:[%s558] sm:$0xff]
          %v1062 = vld [vmem:[#allocation5] sm:$0xff]
          %v1063 = vadd.f32 %v1061, %v1062
          %v1064 = vld [vmem:[%s12] sm:$0x1]
          %v1066 = vlaneseq
          %v1067 = vshrl.u32 %v1066, 7
          %v1068 = vsub.s32 0, %v1067
          %v1069 = vrot.slane %v1064, %v1068
          %v1071 = vadd.f32 %v1063, %v1069
          %v1072 = vld [vmem:[%s3] sm:$0x1]
          %v1073 = vld [vmem:[%s4] sm:$0x1]
          %v1074 = vsel %vm1055, %v1071, 0.0
          %1075 = vadd.xlane.f32.xlu0 %v1074
          %v1076 = vpop.xlane.xlu0 %1075
          %v1077 = vrcp.pop 32.0
          %v1078 = vmul.f32 %v1076, %v1077
          %v1079 = vsub.f32 %v1071, %v1078
          %v1080 = vmul.f32 %v1079, %v1079
          %v1081 = vsel %vm1055, %v1080, 0.0
          %1082 = vadd.xlane.f32.xlu0 %v1081
          %v1083 = vpop.xlane.xlu0 %1082
          %v1084 = vmul.f32 %v1083, %v1077
          %v1085 = vadd.f32 %v1084, 1e-05
          %v1086 = vrsqrt.pop %v1085
          %v1087 = vmul.f32 %v1079, %v1086
          %v1089 = vlaneseq
          %v1090 = vshrl.u32 %v1089, 7
          %v1091 = vsub.s32 0, %v1090
          %v1092 = vrot.slane %v1072, %v1091
          %v1094 = vmul.f32 %v1087, %v1092
          %v1096 = vlaneseq
          %v1097 = vshrl.u32 %v1096, 7
          %v1098 = vsub.s32 0, %v1097
          %v1099 = vrot.slane %v1073, %v1098
          %v1101 = vadd.f32 %v1094, %v1099
          %v1102 = vpack.c.bf16 %v1101, %v1101
          %v1103 = vld [vmem:[%s13] sm:$0xff]
          %v1104 = vld [vmem:[%s13 + $0x8] sm:$0xff]
          %v1105 = vld [vmem:[%s13 + $0x10] sm:$0xff]
          %v1106 = vld [vmem:[%s13 + $0x18] sm:$0xff]
          %v1107 = vpack.c.bf16 %v1104, %v1103
          %v1108 = vpack.c.bf16 %v1106, %v1105
          %v1109 = vld [vmem:[%s14] sm:$0x1]
          %v1111 = vlaneseq
          %v1112 = vshrl.u32 %v1111, 7
          %v1113 = vsub.s32 0, %v1112
          %v1114 = vrot.slane %v1109, %v1113
          %v1117 = vsel %vm1055, %v1102, 0
          %1119 = vmatprep.subr.bf16.mxu0 0
          %1120 = vmatpush1.bf16.msra.mxu0 %v1107
          %1121 = vmatprep.subr.bf16.mxu0 0
          %1122 = vmatpush1.bf16.msra.mxu0 %v1108
          %1123 = vmatprep.subr.bf16.mxu0 0
          %1124 = vmatpush1.bf16.msra.mxu0 0
          %1125 = vmatprep.subr.bf16.mxu0 0
          %1126 = vmatpush1.bf16.msra.mxu0 0
          %1127 = vmatprep.subr.bf16.mxu0 0
          %1128 = vmatpush1.bf16.msra.mxu0 0
          %1129 = vmatprep.subr.bf16.mxu0 0
          %1130 = vmatpush1.bf16.msra.mxu0 0
          %1131 = vmatprep.subr.bf16.mxu0 0
          %1132 = vmatpush1.bf16.msra.mxu0 0
          %1133 = vmatprep.subr.bf16.mxu0 0
          %1134 = vmatpush1.bf16.msra.mxu0 0
          %1135 = vmatprep.subr.bf16.mxu0 0
          %1136 = vmatpush1.bf16.msra.mxu0 0
          %1137 = vmatprep.subr.bf16.mxu0 0
          %1138 = vmatpush1.bf16.msra.mxu0 0
          %1139 = vmatprep.subr.bf16.mxu0 0
          %1140 = vmatpush1.bf16.msra.mxu0 0
          %1141 = vmatprep.subr.bf16.mxu0 0
          %1142 = vmatpush1.bf16.msra.mxu0 0
          %1143 = vmatprep.subr.bf16.mxu0 0
          %1144 = vmatpush1.bf16.msra.mxu0 0
          %1145 = vmatprep.subr.bf16.mxu0 0
          %1146 = vmatpush1.bf16.msra.mxu0 0
          %1147 = vmatprep.subr.bf16.mxu0 0
          %1148 = vmatpush1.bf16.msra.mxu0 0
          %1149 = vmatprep.subr.bf16.mxu0 0
          %1150 = vmatpush1.bf16.msra.mxu0 0
          %1151 = vmatprep.mubr.bf16.mxu0 0
          %1152 = vmatmul.mubr.bf16.gmra.mrb[0].mxu0 %v1117
          %v1153 = vpop.f32.mrb[0].mxu0
          %v1154 = vadd.f32 %v1114, %v1153
          %v1155 = vpop.f32.mrb[0].mxu0
          %v1156 = vpop.f32.mrb[0].mxu0
          %v1157 = vpop.f32.mrb[0].mxu0
          %1158 = vdwg.mxu0
          %v1159 = vmax.f32 %v1154, 0.0
          %v1160 = vpack.c.bf16 %v1159, %v1159
          %v1161 = vld [vmem:[%s15] sm:$0xff]
          %v1162 = vld [vmem:[%s15 + $0x8] sm:$0xff]
          %v1163 = vld [vmem:[%s15 + $0x10] sm:$0xff]
          %v1164 = vld [vmem:[%s15 + $0x18] sm:$0xff]
          %v1165 = vld [vmem:[%s15 + $0x20] sm:$0xff]
          %v1166 = vld [vmem:[%s15 + $0x28] sm:$0xff]
          %v1167 = vld [vmem:[%s15 + $0x30] sm:$0xff]
          %v1168 = vld [vmem:[%s15 + $0x38] sm:$0xff]
          %v1169 = vld [vmem:[%s15 + $0x40] sm:$0xff]
          %v1170 = vld [vmem:[%s15 + $0x48] sm:$0xff]
          %v1171 = vld [vmem:[%s15 + $0x50] sm:$0xff]
          %v1172 = vld [vmem:[%s15 + $0x58] sm:$0xff]
          %v1173 = vld [vmem:[%s15 + $0x60] sm:$0xff]
          %v1174 = vld [vmem:[%s15 + $0x68] sm:$0xff]
          %v1175 = vld [vmem:[%s15 + $0x70] sm:$0xff]
          %v1176 = vld [vmem:[%s15 + $0x78] sm:$0xff]
          %v1177 = vpack.c.bf16 %v1162, %v1161
          %v1178 = vpack.c.bf16 %v1164, %v1163
          %v1179 = vpack.c.bf16 %v1166, %v1165
          %v1180 = vpack.c.bf16 %v1168, %v1167
          %v1181 = vpack.c.bf16 %v1170, %v1169
          %v1182 = vpack.c.bf16 %v1172, %v1171
          %v1183 = vpack.c.bf16 %v1174, %v1173
          %v1184 = vpack.c.bf16 %v1176, %v1175
          %v1185 = vld [vmem:[%s16] sm:$0x1]
          %v1187 = vlaneseq
          %v1188 = vshrl.u32 %v1187, 7
          %v1189 = vsub.s32 0, %v1188
          %v1190 = vrot.slane %v1185, %v1189
          %1192 = vmatprep.subr.bf16.mxu0 0
          %1193 = vmatpush1.bf16.msra.mxu0 %v1177
          %1194 = vmatprep.subr.bf16.mxu0 0
          %1195 = vmatpush1.bf16.msra.mxu0 %v1178
          %1196 = vmatprep.subr.bf16.mxu0 0
          %1197 = vmatpush1.bf16.msra.mxu0 %v1179
          %1198 = vmatprep.subr.bf16.mxu0 0
          %1199 = vmatpush1.bf16.msra.mxu0 %v1180
          %1200 = vmatprep.subr.bf16.mxu0 0
          %1201 = vmatpush1.bf16.msra.mxu0 %v1181
          %1202 = vmatprep.subr.bf16.mxu0 0
          %1203 = vmatpush1.bf16.msra.mxu0 %v1182
          %1204 = vmatprep.subr.bf16.mxu0 0
          %1205 = vmatpush1.bf16.msra.mxu0 %v1183
          %1206 = vmatprep.subr.bf16.mxu0 0
          %1207 = vmatpush1.bf16.msra.mxu0 %v1184
          %1208 = vmatprep.subr.bf16.mxu0 0
          %1209 = vmatpush1.bf16.msra.mxu0 0
          %1210 = vmatprep.subr.bf16.mxu0 0
          %1211 = vmatpush1.bf16.msra.mxu0 0
          %1212 = vmatprep.subr.bf16.mxu0 0
          %1213 = vmatpush1.bf16.msra.mxu0 0
          %1214 = vmatprep.subr.bf16.mxu0 0
          %1215 = vmatpush1.bf16.msra.mxu0 0
          %1216 = vmatprep.subr.bf16.mxu0 0
          %1217 = vmatpush1.bf16.msra.mxu0 0
          %1218 = vmatprep.subr.bf16.mxu0 0
          %1219 = vmatpush1.bf16.msra.mxu0 0
          %1220 = vmatprep.subr.bf16.mxu0 0
          %1221 = vmatpush1.bf16.msra.mxu0 0
          %1222 = vmatprep.subr.bf16.mxu0 0
          %1223 = vmatpush1.bf16.msra.mxu0 0
          %1224 = vmatprep.mubr.bf16.mxu0 0
          %1225 = vmatmul.mubr.bf16.gmra.mrb[0].mxu0 %v1160
          %v1226 = vpop.f32.mrb[0].mxu0
          %v1227 = vadd.f32 %v1190, %v1226
          %v1228 = vpop.f32.mrb[0].mxu0
          %v1229 = vpop.f32.mrb[0].mxu0
          %v1230 = vpop.f32.mrb[0].mxu0
          %1231 = vdwg.mxu0
          %v1232 = vadd.f32 %v1071, %v1227
          %1233 = vst.msk [vmem:[%s608] sm:$0xff] %vm1055, %v1232
        $region100: #{tpu_custom_call.1} parent=87 // pred_fallthru
          _
        %s1234 = sand.u32 %s421, 1
        %s1235 = scalar_lea.sflag [#allocation8], %s1234
        %s1236 = sand.u32 %s421, 1
        %s1237 = smul.addr %s1236, 8
        %s1238 = scalar_lea.vmem [#allocation9], %s1237
        %s1239 = sand.u32 %s449, 1
        %s1240 = scalar_lea.sflag [#allocation11], %s1239
        %s1241 = sand.u32 %s449, 1
        %s1242 = smul.addr %s1241, 8
        %s1243 = scalar_lea.vmem [#allocation10], %s1242
        // Predicated region
        $region101: #{tpu_custom_call.1} parent=87 // pred_check
          %p1244 = pneg %p431
        $region102: #{tpu_custom_call.1} parent=87 // pred_check_branch
          %1246 = sbr.rel (%p1244) target = $region104
        $region103: #{tpu_custom_call.1} parent=87 // pred_region
          %s1248 = ssub.s32 128, 128
          %1249 = vsyncadd %s1235, %s1248
          %s1250 = smul.addr %s43, 128
          %s1251 = scalar_lea.hbm %s17, %s1250
          %s1253 = sshll.u32 %s1238, 4
          %s1254 = int_to_ptr.vmem [resolvable:$true] %s1253
          %1256 = dma.vmem_to_hbm [thread:$0]  %s1254, 128, %s1251, %s1235
        $region104: #{tpu_custom_call.1} parent=87 // pred_fallthru
          _
        // Predicated region
        $region105: #{tpu_custom_call.1} parent=87 // pred_check
          %p1257 = pneg %p459
        $region106: #{tpu_custom_call.1} parent=87 // pred_check_branch
          %1259 = sbr.rel (%p1257) target = $region108
        $region107: #{tpu_custom_call.1} parent=87 // pred_region
          %s1261 = ssub.s32 128, 128
          %1262 = vsyncadd %s1240, %s1261
          %s1263 = smul.addr %s43, 4
          %s1264 = sadd.s32 %s44, %s1263
          %s1265 = smul.addr %s1264, 128
          %s1266 = scalar_lea.hbm %s18, %s1265
          %s1268 = sshll.u32 %s1243, 4
          %s1269 = int_to_ptr.vmem [resolvable:$true] %s1268
          %1271 = dma.vmem_to_hbm [thread:$0]  %s1269, 128, %s1266, %s1240
        $region108: #{tpu_custom_call.1} parent=87 // pred_fallthru
          _
      $region88: #{tpu_custom_call.1} parent=5 // pred_fallthru
        _
      %p1272 = scmp.le.s32.totalorder 2, %s34
      // Predicated region
      $region109: #{tpu_custom_call.1} parent=5 // pred_check
        %p1273 = pneg %p1272
      $region110: #{tpu_custom_call.1} parent=5 // pred_check_branch
        %1275 = sbr.rel (%p1273) target = $region112
      $region111: #{tpu_custom_call.1} parent=5 // pred_region
        %s1276 = ssub.s32 %s34, 2
        // Predicated region
        $region113: #{tpu_custom_call.1} parent=111 // pred_check
          %p1277 = pneg %p437
        $region114: #{tpu_custom_call.1} parent=111 // pred_check_branch
          %1279 = sbr.rel (%p1277) target = $region116
        $region115: #{tpu_custom_call.1} parent=111 // pred_region
          %s1280 = sand.u32 %s422, 1
          %s1281 = scalar_lea.sflag [#allocation8], %s1280
          %s1282 = sand.u32 %s422, 1
          %s1283 = smul.addr %s1282, 8
          %s1284 = scalar_lea.vmem [#allocation9], %s1283
          %1285 = dma.done %s1281, 128
        $region116: #{tpu_custom_call.1} parent=111 // pred_fallthru
          _
        // Predicated region
        $region117: #{tpu_custom_call.1} parent=111 // pred_check
          %p1286 = pneg %p465
        $region118: #{tpu_custom_call.1} parent=111 // pred_check_branch
          %1288 = sbr.rel (%p1286) target = $region120
        $region119: #{tpu_custom_call.1} parent=111 // pred_region
          %s1289 = sand.u32 %s450, 1
          %s1290 = scalar_lea.sflag [#allocation11], %s1289
          %s1291 = sand.u32 %s450, 1
          %s1292 = smul.addr %s1291, 8
          %s1293 = scalar_lea.vmem [#allocation10], %s1292
          %1294 = dma.done %s1290, 128
        $region120: #{tpu_custom_call.1} parent=111 // pred_fallthru
          _
      $region112: #{tpu_custom_call.1} parent=5 // pred_fallthru
        _
    $region6: #{tpu_custom_call.1} parent=1 // loop_footer
      %s38 = sadd.s32 1, %s34
    $region7: #{tpu_custom_call.1} parent=1 // loop_footer_branch
      %33 = sbr.rel target = $region3
    $region8: #{tpu_custom_call.1} parent=1 // loop_exit
      _
    %1295 = vsyncpa [#allocation7], 1
    %s1296 = scalar_lea.sflag [#allocation7], 1
    %1297 = vsyncpa %s1296, 1
    %1298 = vsyncpa [#allocation8], 1
    %s1299 = scalar_lea.sflag [#allocation8], 1
    %1300 = vsyncpa %s1299, 1
    %1301 = vsyncpa [#allocation11], 1
    %s1302 = scalar_lea.sflag [#allocation11], 1
    %1303 = vsyncpa %s1302, 1

</llo_original>
